<compile_context>
chip_gen: v6e
topology: v6e:2x2x1
jax: 0.10.0
libtpu: 0.0.40
codegen_flags: <defaults>
</compile_context>

<pallas_src>
import jax
import jax.numpy as jnp
from jax import lax
from jax.experimental import pallas as pl
from jax.experimental.pallas import tpu as pltpu


# ---------------------------------------------------------------------------
# Fused Pallas kernel: 3x (GATConv + ELU) + Linear + Sigmoid
# ---------------------------------------------------------------------------
def fused_gat_kernel(
    x_ref, adj_ref,
    w1_ref, a1s_ref, a1d_ref, b1_ref,
    w2_ref, a2s_ref, a2d_ref, b2_ref,
    w3_ref, a3s_ref, a3d_ref, b3_ref,
    lw_ref, lb_ref,
    out_ref,
    h_scr,
):
    """All tensors are feature-padded to F_PAD lanes and node-padded to N_PAD.

    x_ref:   (N_PAD, F_PAD)   padded node features
    adj_ref: (N_PAD, N_PAD)   int8, adj[i, j] != 0 iff edge j -> i (+ self loops)
    w*_ref:  (F_PAD, F_PAD)   layer weight (x @ W form), zero-padded
    a*s/a*d: (1, F_PAD)       attention vectors a_src / a_dst, zero-padded
    b*_ref:  (1, F_PAD)       bias, zero-padded
    lw_ref:  (1, F_PAD)       head weight row (lin_w transposed), zero-padded
    lb_ref:  (1, 1)           head bias
    out_ref: (1, N_PAD)       sigmoid(logits) as a lane-dense row
    h_scr:   (N_PAD, F_PAD)   VMEM scratch holding the running hidden state
    """
    mask = adj_ref[...] != 0                       # (N, N) bool, from int8
    neg = jnp.float32(-1e30)

    h_scr[...] = x_ref[...]

    def gat_layer(w_ref, as_ref, ad_ref, b_ref):
        h_in = h_scr[...]
        h = jnp.dot(h_in, w_ref[...], preferred_element_type=jnp.float32)  # (N, F)

        # Per-node attention scores on the MXU (no XLU transpose):
        #   a_dst_col[i] = <h_i, a_dst>   -> (N, 1)
        #   a_src_row[j] = <h_j, a_src>   -> (1, N)
        a_dst_col = lax.dot_general(
            h, ad_ref[...],
            dimension_numbers=(((1,), (1,)), ((), ())),
            preferred_element_type=jnp.float32)                            # (N, 1)
        a_src_row = lax.dot_general(
            as_ref[...], h,
            dimension_numbers=(((1,), (1,)), ((), ())),
            preferred_element_type=jnp.float32)                            # (1, N)

        # e[i, j] = LeakyReLU(a_dst[i] + a_src[j], 0.2)
        e = a_dst_col + a_src_row                                          # (N, N)
        e = jnp.where(e > 0, e, 0.2 * e)

        # Masked softmax over sources j. Masked entries sit at ~-1e30, so after
        # subtracting the row max their exp underflows to exactly 0 — no second
        # mask select needed.
        e = jnp.where(mask, e, neg)
        e = e - jnp.max(e, axis=1, keepdims=True)
        p = jnp.exp(e)
        denom = jnp.sum(p, axis=1, keepdims=True)
        attn = p * pl.reciprocal(denom, approx=True)                       # (N, N)

        # Aggregate with bf16 MXU inputs, f32 accumulation.
        out = jnp.dot(attn.astype(jnp.bfloat16), h.astype(jnp.bfloat16),
                      preferred_element_type=jnp.float32)
        out = out + b_ref[...]
        # ELU (alpha = 1); padded feature columns stay exactly 0.
        h_scr[...] = jnp.where(out > 0, out, jnp.exp(out) - 1.0)

    gat_layer(w1_ref, a1s_ref, a1d_ref, b1_ref)
    gat_layer(w2_ref, a2s_ref, a2d_ref, b2_ref)
    gat_layer(w3_ref, a3s_ref, a3d_ref, b3_ref)

    # Head: Linear(hidden_dim3, 1) + sigmoid, produced lane-dense as (1, N).
    h = h_scr[...]
    z = lax.dot_general(
        lw_ref[...], h,
        dimension_numbers=(((1,), (1,)), ((), ())),
        preferred_element_type=jnp.float32)                                # (1, N)
    z = z + lb_ref[...]
    out_ref[...] = 1.0 / (1.0 + jnp.exp(-z))


# ---------------------------------------------------------------------------
# Wrappers / glue (plain JAX)
# ---------------------------------------------------------------------------
F_PAD = 128   # pad every feature dimension to a full lane width


def _vmem_spec():
    return pl.BlockSpec(memory_space=pltpu.MemorySpace.VMEM)


def _pad2(a, rows, cols):
    r, c = a.shape
    return jnp.pad(a, ((0, rows - r), (0, cols - c)))


def build_adjacency(edge_index, num_nodes_padded):
    """Dense int8 mask adj[i, j] = 1 iff edge j -> i, plus self loops.

    Self loops are added for padded rows too so every softmax row has at least
    one unmasked entry (padded rows are discarded by the wrapper).
    """
    src = edge_index[0]
    dst = edge_index[1]
    adj = jnp.zeros((num_nodes_padded, num_nodes_padded), dtype=jnp.int8)
    adj = adj.at[dst, src].set(jnp.int8(1))
    return jnp.maximum(adj, jnp.eye(num_nodes_padded, dtype=jnp.int8))


def init_params(key, input_dim, h1, h2, h3):
    """Deterministic glorot-ish init for all GATConv / Linear parameters."""
    ks = jax.random.split(key, 16)

    def glorot(k, shape):
        fan_in, fan_out = shape[0], shape[-1]
        scale = jnp.sqrt(6.0 / (fan_in + fan_out))
        return jax.random.uniform(k, shape, jnp.float32, -scale, scale)

    def gat_params(k0, k1, k2, fin, fout):
        return dict(
            w=glorot(k0, (fin, fout)),               # lin weight (x @ W)
            a_src=glorot(k1, (1, fout)),              # att_src
            a_dst=glorot(k2, (1, fout)),              # att_dst
            b=jnp.zeros((1, fout), jnp.float32),      # bias (zero-init in PyG)
        )

    return dict(
        conv1=gat_params(ks[0], ks[1], ks[2], input_dim, h1),
        conv2=gat_params(ks[3], ks[4], ks[5], h1, h2),
        conv3=gat_params(ks[6], ks[7], ks[8], h2, h3),
        lin_w=glorot(ks[9], (h3, 1)),
        lin_b=jnp.zeros((1, 1), jnp.float32),
    )


def gat_conv_forward(params, x, edge_index, edge_weight):
    """Eval-mode forward pass of GAT_Conv.

    edge_weight is accepted but unused: PyG GATConv with edge_dim=None ignores it.
    """
    # TODO(synk): training-mode dropout (p=0.2) not implemented; eval mode is identity.
    n = x.shape[0]
    n_pad = max(8, ((n + 7) // 8) * 8)          # sublane-align the node axis

    adj = build_adjacency(edge_index, n_pad)     # int8 (n_pad, n_pad)
    x_p = _pad2(x, n_pad, F_PAD)

    def pad_layer(p):
        return (_pad2(p["w"], F_PAD, F_PAD),
                _pad2(p["a_src"], 1, F_PAD),
                _pad2(p["a_dst"], 1, F_PAD),
                _pad2(p["b"], 1, F_PAD))

    args = [x_p, adj]
    for name in ("conv1", "conv2", "conv3"):
        args.extend(pad_layer(params[name]))
    args.append(_pad2(params["lin_w"].T, 1, F_PAD))   # (1, F_PAD) head weight row
    args.append(params["lin_b"])                       # (1, 1)

    out_row = pl.pallas_call(
        fused_gat_kernel,
        out_shape=jax.ShapeDtypeStruct((1, n_pad), jnp.float32),
        in_specs=[_vmem_spec()] * len(args),
        out_specs=_vmem_spec(),
        scratch_shapes=[pltpu.VMEM((n_pad, F_PAD), jnp.float32)],
    )(*args)

    return out_row[0, :n]                               # (N,)


# ---------------------------------------------------------------------------
# Main
# ---------------------------------------------------------------------------
if __name__ == "__main__":
    key = jax.random.PRNGKey(0)
    k_x, k_e, k_w, k_p = jax.random.split(key, 4)

    N = 16           # number of graph nodes
    E = 40           # number of directed edges
    input_dim, h1, h2, h3 = 8, 16, 16, 8

    x = jax.random.normal(k_x, (N, input_dim), dtype=jnp.float32)
    edge_index = jax.random.randint(k_e, (2, E), 0, N, dtype=jnp.int32)
    edge_weight = jax.random.uniform(k_w, (E,), dtype=jnp.float32)   # unused by GATConv

    params = init_params(k_p, input_dim, h1, h2, h3)

    out = gat_conv_forward(params, x, edge_index, edge_weight)
    out = jax.block_until_ready(out)

    assert out.shape == (N,), out.shape
    assert bool(jnp.all(jnp.isfinite(out))), "non-finite output"
    assert bool(jnp.all((out >= 0.0) & (out <= 1.0))), "sigmoid range violated"
    print("KERNEL_OK")
</pallas_src>

<mosaic_0001>
module attributes {stable_mosaic.version = 11 : i64} {
  func.func @fused_gat_kernel(%arg0: memref<16x128xf32, #tpu.memory_space<vmem>>, %arg1: memref<16x16xi8, #tpu.memory_space<vmem>>, %arg2: memref<128x128xf32, #tpu.memory_space<vmem>>, %arg3: memref<1x128xf32, #tpu.memory_space<vmem>>, %arg4: memref<1x128xf32, #tpu.memory_space<vmem>>, %arg5: memref<1x128xf32, #tpu.memory_space<vmem>>, %arg6: memref<128x128xf32, #tpu.memory_space<vmem>>, %arg7: memref<1x128xf32, #tpu.memory_space<vmem>>, %arg8: memref<1x128xf32, #tpu.memory_space<vmem>>, %arg9: memref<1x128xf32, #tpu.memory_space<vmem>>, %arg10: memref<128x128xf32, #tpu.memory_space<vmem>>, %arg11: memref<1x128xf32, #tpu.memory_space<vmem>>, %arg12: memref<1x128xf32, #tpu.memory_space<vmem>>, %arg13: memref<1x128xf32, #tpu.memory_space<vmem>>, %arg14: memref<1x128xf32, #tpu.memory_space<vmem>>, %arg15: memref<1x1xf32, #tpu.memory_space<vmem>>, %arg16: memref<1x16xf32, #tpu.memory_space<vmem>>, %arg17: memref<16x128xf32, #tpu.memory_space<vmem>>) attributes {dimension_semantics = [], scalar_prefetch = 0 : i64, scratch_operands = 1 : i64, tpu.core_type = #tpu.core_type<tc>} {
    %c0 = arith.constant 0 : index
    %c0_0 = arith.constant 0 : index
    %0 = vector.load %arg1[%c0, %c0_0] : memref<16x16xi8, #tpu.memory_space<vmem>>, vector<16x16xi8>
    %c0_i8 = arith.constant 0 : i8
    %1 = vector.broadcast %c0_i8 : i8 to vector<16x16xi8>
    %2 = arith.cmpi ne, %0, %1 : vector<16x16xi8>
    %c0_1 = arith.constant 0 : index
    %c0_2 = arith.constant 0 : index
    %3 = vector.load %arg0[%c0_1, %c0_2] : memref<16x128xf32, #tpu.memory_space<vmem>>, vector<16x128xf32>
    %c0_3 = arith.constant 0 : index
    %c0_4 = arith.constant 0 : index
    %4 = vector.load %arg17[%c0_3, %c0_4] : memref<16x128xf32, #tpu.memory_space<vmem>>, vector<16x128xf32>
    tpu.vector_store %arg17[%c0_3, %c0_4], %3 {strides = array<i32>} : memref<16x128xf32, #tpu.memory_space<vmem>>, vector<16x128xf32>,
    %c0_5 = arith.constant 0 : index
    %c0_6 = arith.constant 0 : index
    %5 = vector.load %arg17[%c0_5, %c0_6] : memref<16x128xf32, #tpu.memory_space<vmem>>, vector<16x128xf32>
    %c0_7 = arith.constant 0 : index
    %c0_8 = arith.constant 0 : index
    %6 = vector.load %arg2[%c0_7, %c0_8] : memref<128x128xf32, #tpu.memory_space<vmem>>, vector<128x128xf32>
    %cst = arith.constant dense<0.000000e+00> : vector<16x128xf32>
    %7 = tpu.matmul %5, %6, %cst {dimension_numbers = #tpu.dot_dimension_numbers<[1], [0], [0], [1], [0, 0, 1, 1], [], []>} : vector<16x128xf32>, vector<128x128xf32>, vector<16x128xf32> -> vector<16x128xf32>
    %c0_9 = arith.constant 0 : index
    %c0_10 = arith.constant 0 : index
    %8 = vector.load %arg4[%c0_9, %c0_10] : memref<1x128xf32, #tpu.memory_space<vmem>>, vector<1x128xf32>
    %cst_11 = arith.constant dense<0.000000e+00> : vector<16x1xf32>
    %9 = tpu.matmul %7, %8, %cst_11 {dimension_numbers = #tpu.dot_dimension_numbers<[1], [1], [0], [0], [0, 0, 1, 0], [], []>} : vector<16x128xf32>, vector<1x128xf32>, vector<16x1xf32> -> vector<16x1xf32>
    %c0_12 = arith.constant 0 : index
    %c0_13 = arith.constant 0 : index
    %10 = vector.load %arg3[%c0_12, %c0_13] : memref<1x128xf32, #tpu.memory_space<vmem>>, vector<1x128xf32>
    %cst_14 = arith.constant dense<0.000000e+00> : vector<1x16xf32>
    %11 = tpu.matmul %10, %7, %cst_14 {dimension_numbers = #tpu.dot_dimension_numbers<[1], [1], [0], [0], [0, 0, 1, 0], [], []>} : vector<1x128xf32>, vector<16x128xf32>, vector<1x16xf32> -> vector<1x16xf32>
    %12 = vector.broadcast %9 : vector<16x1xf32> to vector<16x16xf32>
    %13 = vector.broadcast %11 : vector<1x16xf32> to vector<16x16xf32>
    %14 = arith.addf %12, %13 : vector<16x16xf32>
    %cst_15 = arith.constant 0.000000e+00 : f32
    %15 = vector.broadcast %cst_15 : f32 to vector<16x16xf32>
    %16 = arith.cmpf ogt, %14, %15 : vector<16x16xf32>
    %cst_16 = arith.constant 2.000000e-01 : f32
    %17 = vector.broadcast %cst_16 : f32 to vector<16x16xf32>
    %18 = arith.mulf %17, %14 : vector<16x16xf32>
    %19 = arith.select %16, %14, %18 : vector<16x16xi1>, vector<16x16xf32>
    %cst_17 = arith.constant -1.000000e+30 : f32
    %20 = vector.broadcast %cst_17 : f32 to vector<16x16xf32>
    %21 = arith.select %2, %19, %20 : vector<16x16xi1>, vector<16x16xf32>
    %cst_18 = arith.constant dense<0xFF800000> : vector<16xf32>
    %22 = vector.multi_reduction <maximumf>, %21, %cst_18 [1] : vector<16x16xf32> to vector<16xf32>
    %23 = vector.shape_cast %22 : vector<16xf32> to vector<16x1xf32>
    %24 = vector.broadcast %23 : vector<16x1xf32> to vector<16x16xf32>
    %25 = arith.subf %21, %24 : vector<16x16xf32>
    %26 = math.exp %25 : vector<16x16xf32>
    %cst_19 = arith.constant dense<0.000000e+00> : vector<16xf32>
    %27 = vector.multi_reduction <add>, %26, %cst_19 [1] : vector<16x16xf32> to vector<16xf32>
    %28 = vector.shape_cast %27 : vector<16xf32> to vector<16x1xf32>
    %29 = tpu.reciprocal %28 {approx = true} : vector<16x1xf32> -> vector<16x1xf32>
    %30 = vector.broadcast %29 : vector<16x1xf32> to vector<16x16xf32>
    %31 = arith.mulf %26, %30 : vector<16x16xf32>
    %32 = arith.truncf %31 : vector<16x16xf32> to vector<16x16xbf16>
    %33 = arith.truncf %7 : vector<16x128xf32> to vector<16x128xbf16>
    %cst_20 = arith.constant dense<0.000000e+00> : vector<16x128xf32>
    %34 = tpu.matmul %32, %33, %cst_20 {dimension_numbers = #tpu.dot_dimension_numbers<[1], [0], [0], [1], [0, 0, 1, 1], [], []>} : vector<16x16xbf16>, vector<16x128xbf16>, vector<16x128xf32> -> vector<16x128xf32>
    %c0_21 = arith.constant 0 : index
    %c0_22 = arith.constant 0 : index
    %35 = vector.load %arg5[%c0_21, %c0_22] : memref<1x128xf32, #tpu.memory_space<vmem>>, vector<1x128xf32>
    %36 = vector.broadcast %35 : vector<1x128xf32> to vector<16x128xf32>
    %37 = arith.addf %34, %36 : vector<16x128xf32>
    %cst_23 = arith.constant 0.000000e+00 : f32
    %38 = vector.broadcast %cst_23 : f32 to vector<16x128xf32>
    %39 = arith.cmpf ogt, %37, %38 : vector<16x128xf32>
    %40 = math.exp %37 : vector<16x128xf32>
    %cst_24 = arith.constant 1.000000e+00 : f32
    %41 = vector.broadcast %cst_24 : f32 to vector<16x128xf32>
    %42 = arith.subf %40, %41 : vector<16x128xf32>
    %43 = arith.select %39, %37, %42 : vector<16x128xi1>, vector<16x128xf32>
    %c0_25 = arith.constant 0 : index
    %c0_26 = arith.constant 0 : index
    %44 = vector.load %arg17[%c0_25, %c0_26] : memref<16x128xf32, #tpu.memory_space<vmem>>, vector<16x128xf32>
    tpu.vector_store %arg17[%c0_25, %c0_26], %43 {strides = array<i32>} : memref<16x128xf32, #tpu.memory_space<vmem>>, vector<16x128xf32>,
    %c0_27 = arith.constant 0 : index
    %c0_28 = arith.constant 0 : index
    %45 = vector.load %arg17[%c0_27, %c0_28] : memref<16x128xf32, #tpu.memory_space<vmem>>, vector<16x128xf32>
    %c0_29 = arith.constant 0 : index
    %c0_30 = arith.constant 0 : index
    %46 = vector.load %arg6[%c0_29, %c0_30] : memref<128x128xf32, #tpu.memory_space<vmem>>, vector<128x128xf32>
    %cst_31 = arith.constant dense<0.000000e+00> : vector<16x128xf32>
    %47 = tpu.matmul %45, %46, %cst_31 {dimension_numbers = #tpu.dot_dimension_numbers<[1], [0], [0], [1], [0, 0, 1, 1], [], []>} : vector<16x128xf32>, vector<128x128xf32>, vector<16x128xf32> -> vector<16x128xf32>
    %c0_32 = arith.constant 0 : index
    %c0_33 = arith.constant 0 : index
    %48 = vector.load %arg8[%c0_32, %c0_33] : memref<1x128xf32, #tpu.memory_space<vmem>>, vector<1x128xf32>
    %cst_34 = arith.constant dense<0.000000e+00> : vector<16x1xf32>
    %49 = tpu.matmul %47, %48, %cst_34 {dimension_numbers = #tpu.dot_dimension_numbers<[1], [1], [0], [0], [0, 0, 1, 0], [], []>} : vector<16x128xf32>, vector<1x128xf32>, vector<16x1xf32> -> vector<16x1xf32>
    %c0_35 = arith.constant 0 : index
    %c0_36 = arith.constant 0 : index
    %50 = vector.load %arg7[%c0_35, %c0_36] : memref<1x128xf32, #tpu.memory_space<vmem>>, vector<1x128xf32>
    %cst_37 = arith.constant dense<0.000000e+00> : vector<1x16xf32>
    %51 = tpu.matmul %50, %47, %cst_37 {dimension_numbers = #tpu.dot_dimension_numbers<[1], [1], [0], [0], [0, 0, 1, 0], [], []>} : vector<1x128xf32>, vector<16x128xf32>, vector<1x16xf32> -> vector<1x16xf32>
    %52 = vector.broadcast %49 : vector<16x1xf32> to vector<16x16xf32>
    %53 = vector.broadcast %51 : vector<1x16xf32> to vector<16x16xf32>
    %54 = arith.addf %52, %53 : vector<16x16xf32>
    %cst_38 = arith.constant 0.000000e+00 : f32
    %55 = vector.broadcast %cst_38 : f32 to vector<16x16xf32>
    %56 = arith.cmpf ogt, %54, %55 : vector<16x16xf32>
    %cst_39 = arith.constant 2.000000e-01 : f32
    %57 = vector.broadcast %cst_39 : f32 to vector<16x16xf32>
    %58 = arith.mulf %57, %54 : vector<16x16xf32>
    %59 = arith.select %56, %54, %58 : vector<16x16xi1>, vector<16x16xf32>
    %cst_40 = arith.constant -1.000000e+30 : f32
    %60 = vector.broadcast %cst_40 : f32 to vector<16x16xf32>
    %61 = arith.select %2, %59, %60 : vector<16x16xi1>, vector<16x16xf32>
    %cst_41 = arith.constant dense<0xFF800000> : vector<16xf32>
    %62 = vector.multi_reduction <maximumf>, %61, %cst_41 [1] : vector<16x16xf32> to vector<16xf32>
    %63 = vector.shape_cast %62 : vector<16xf32> to vector<16x1xf32>
    %64 = vector.broadcast %63 : vector<16x1xf32> to vector<16x16xf32>
    %65 = arith.subf %61, %64 : vector<16x16xf32>
    %66 = math.exp %65 : vector<16x16xf32>
    %cst_42 = arith.constant dense<0.000000e+00> : vector<16xf32>
    %67 = vector.multi_reduction <add>, %66, %cst_42 [1] : vector<16x16xf32> to vector<16xf32>
    %68 = vector.shape_cast %67 : vector<16xf32> to vector<16x1xf32>
    %69 = tpu.reciprocal %68 {approx = true} : vector<16x1xf32> -> vector<16x1xf32>
    %70 = vector.broadcast %69 : vector<16x1xf32> to vector<16x16xf32>
    %71 = arith.mulf %66, %70 : vector<16x16xf32>
    %72 = arith.truncf %71 : vector<16x16xf32> to vector<16x16xbf16>
    %73 = arith.truncf %47 : vector<16x128xf32> to vector<16x128xbf16>
    %cst_43 = arith.constant dense<0.000000e+00> : vector<16x128xf32>
    %74 = tpu.matmul %72, %73, %cst_43 {dimension_numbers = #tpu.dot_dimension_numbers<[1], [0], [0], [1], [0, 0, 1, 1], [], []>} : vector<16x16xbf16>, vector<16x128xbf16>, vector<16x128xf32> -> vector<16x128xf32>
    %c0_44 = arith.constant 0 : index
    %c0_45 = arith.constant 0 : index
    %75 = vector.load %arg9[%c0_44, %c0_45] : memref<1x128xf32, #tpu.memory_space<vmem>>, vector<1x128xf32>
    %76 = vector.broadcast %75 : vector<1x128xf32> to vector<16x128xf32>
    %77 = arith.addf %74, %76 : vector<16x128xf32>
    %cst_46 = arith.constant 0.000000e+00 : f32
    %78 = vector.broadcast %cst_46 : f32 to vector<16x128xf32>
    %79 = arith.cmpf ogt, %77, %78 : vector<16x128xf32>
    %80 = math.exp %77 : vector<16x128xf32>
    %cst_47 = arith.constant 1.000000e+00 : f32
    %81 = vector.broadcast %cst_47 : f32 to vector<16x128xf32>
    %82 = arith.subf %80, %81 : vector<16x128xf32>
    %83 = arith.select %79, %77, %82 : vector<16x128xi1>, vector<16x128xf32>
    %c0_48 = arith.constant 0 : index
    %c0_49 = arith.constant 0 : index
    %84 = vector.load %arg17[%c0_48, %c0_49] : memref<16x128xf32, #tpu.memory_space<vmem>>, vector<16x128xf32>
    tpu.vector_store %arg17[%c0_48, %c0_49], %83 {strides = array<i32>} : memref<16x128xf32, #tpu.memory_space<vmem>>, vector<16x128xf32>,
    %c0_50 = arith.constant 0 : index
    %c0_51 = arith.constant 0 : index
    %85 = vector.load %arg17[%c0_50, %c0_51] : memref<16x128xf32, #tpu.memory_space<vmem>>, vector<16x128xf32>
    %c0_52 = arith.constant 0 : index
    %c0_53 = arith.constant 0 : index
    %86 = vector.load %arg10[%c0_52, %c0_53] : memref<128x128xf32, #tpu.memory_space<vmem>>, vector<128x128xf32>
    %cst_54 = arith.constant dense<0.000000e+00> : vector<16x128xf32>
    %87 = tpu.matmul %85, %86, %cst_54 {dimension_numbers = #tpu.dot_dimension_numbers<[1], [0], [0], [1], [0, 0, 1, 1], [], []>} : vector<16x128xf32>, vector<128x128xf32>, vector<16x128xf32> -> vector<16x128xf32>
    %c0_55 = arith.constant 0 : index
    %c0_56 = arith.constant 0 : index
    %88 = vector.load %arg12[%c0_55, %c0_56] : memref<1x128xf32, #tpu.memory_space<vmem>>, vector<1x128xf32>
    %cst_57 = arith.constant dense<0.000000e+00> : vector<16x1xf32>
    %89 = tpu.matmul %87, %88, %cst_57 {dimension_numbers = #tpu.dot_dimension_numbers<[1], [1], [0], [0], [0, 0, 1, 0], [], []>} : vector<16x128xf32>, vector<1x128xf32>, vector<16x1xf32> -> vector<16x1xf32>
    %c0_58 = arith.constant 0 : index
    %c0_59 = arith.constant 0 : index
    %90 = vector.load %arg11[%c0_58, %c0_59] : memref<1x128xf32, #tpu.memory_space<vmem>>, vector<1x128xf32>
    %cst_60 = arith.constant dense<0.000000e+00> : vector<1x16xf32>
    %91 = tpu.matmul %90, %87, %cst_60 {dimension_numbers = #tpu.dot_dimension_numbers<[1], [1], [0], [0], [0, 0, 1, 0], [], []>} : vector<1x128xf32>, vector<16x128xf32>, vector<1x16xf32> -> vector<1x16xf32>
    %92 = vector.broadcast %89 : vector<16x1xf32> to vector<16x16xf32>
    %93 = vector.broadcast %91 : vector<1x16xf32> to vector<16x16xf32>
    %94 = arith.addf %92, %93 : vector<16x16xf32>
    %cst_61 = arith.constant 0.000000e+00 : f32
    %95 = vector.broadcast %cst_61 : f32 to vector<16x16xf32>
    %96 = arith.cmpf ogt, %94, %95 : vector<16x16xf32>
    %cst_62 = arith.constant 2.000000e-01 : f32
    %97 = vector.broadcast %cst_62 : f32 to vector<16x16xf32>
    %98 = arith.mulf %97, %94 : vector<16x16xf32>
    %99 = arith.select %96, %94, %98 : vector<16x16xi1>, vector<16x16xf32>
    %cst_63 = arith.constant -1.000000e+30 : f32
    %100 = vector.broadcast %cst_63 : f32 to vector<16x16xf32>
    %101 = arith.select %2, %99, %100 : vector<16x16xi1>, vector<16x16xf32>
    %cst_64 = arith.constant dense<0xFF800000> : vector<16xf32>
    %102 = vector.multi_reduction <maximumf>, %101, %cst_64 [1] : vector<16x16xf32> to vector<16xf32>
    %103 = vector.shape_cast %102 : vector<16xf32> to vector<16x1xf32>
    %104 = vector.broadcast %103 : vector<16x1xf32> to vector<16x16xf32>
    %105 = arith.subf %101, %104 : vector<16x16xf32>
    %106 = math.exp %105 : vector<16x16xf32>
    %cst_65 = arith.constant dense<0.000000e+00> : vector<16xf32>
    %107 = vector.multi_reduction <add>, %106, %cst_65 [1] : vector<16x16xf32> to vector<16xf32>
    %108 = vector.shape_cast %107 : vector<16xf32> to vector<16x1xf32>
    %109 = tpu.reciprocal %108 {approx = true} : vector<16x1xf32> -> vector<16x1xf32>
    %110 = vector.broadcast %109 : vector<16x1xf32> to vector<16x16xf32>
    %111 = arith.mulf %106, %110 : vector<16x16xf32>
    %112 = arith.truncf %111 : vector<16x16xf32> to vector<16x16xbf16>
    %113 = arith.truncf %87 : vector<16x128xf32> to vector<16x128xbf16>
    %cst_66 = arith.constant dense<0.000000e+00> : vector<16x128xf32>
    %114 = tpu.matmul %112, %113, %cst_66 {dimension_numbers = #tpu.dot_dimension_numbers<[1], [0], [0], [1], [0, 0, 1, 1], [], []>} : vector<16x16xbf16>, vector<16x128xbf16>, vector<16x128xf32> -> vector<16x128xf32>
    %c0_67 = arith.constant 0 : index
    %c0_68 = arith.constant 0 : index
    %115 = vector.load %arg13[%c0_67, %c0_68] : memref<1x128xf32, #tpu.memory_space<vmem>>, vector<1x128xf32>
    %116 = vector.broadcast %115 : vector<1x128xf32> to vector<16x128xf32>
    %117 = arith.addf %114, %116 : vector<16x128xf32>
    %cst_69 = arith.constant 0.000000e+00 : f32
    %118 = vector.broadcast %cst_69 : f32 to vector<16x128xf32>
    %119 = arith.cmpf ogt, %117, %118 : vector<16x128xf32>
    %120 = math.exp %117 : vector<16x128xf32>
    %cst_70 = arith.constant 1.000000e+00 : f32
    %121 = vector.broadcast %cst_70 : f32 to vector<16x128xf32>
    %122 = arith.subf %120, %121 : vector<16x128xf32>
    %123 = arith.select %119, %117, %122 : vector<16x128xi1>, vector<16x128xf32>
    %c0_71 = arith.constant 0 : index
    %c0_72 = arith.constant 0 : index
    %124 = vector.load %arg17[%c0_71, %c0_72] : memref<16x128xf32, #tpu.memory_space<vmem>>, vector<16x128xf32>
    tpu.vector_store %arg17[%c0_71, %c0_72], %123 {strides = array<i32>} : memref<16x128xf32, #tpu.memory_space<vmem>>, vector<16x128xf32>,
    %c0_73 = arith.constant 0 : index
    %c0_74 = arith.constant 0 : index
    %125 = vector.load %arg17[%c0_73, %c0_74] : memref<16x128xf32, #tpu.memory_space<vmem>>, vector<16x128xf32>
    %c0_75 = arith.constant 0 : index
    %c0_76 = arith.constant 0 : index
    %126 = vector.load %arg14[%c0_75, %c0_76] : memref<1x128xf32, #tpu.memory_space<vmem>>, vector<1x128xf32>
    %cst_77 = arith.constant dense<0.000000e+00> : vector<1x16xf32>
    %127 = tpu.matmul %126, %125, %cst_77 {dimension_numbers = #tpu.dot_dimension_numbers<[1], [1], [0], [0], [0, 0, 1, 0], [], []>} : vector<1x128xf32>, vector<16x128xf32>, vector<1x16xf32> -> vector<1x16xf32>
    %c0_78 = arith.constant 0 : index
    %c0_79 = arith.constant 0 : index
    %128 = vector.load %arg15[%c0_78, %c0_79] : memref<1x1xf32, #tpu.memory_space<vmem>>, vector<1x1xf32>
    %129 = vector.broadcast %128 : vector<1x1xf32> to vector<1x16xf32>
    %130 = arith.addf %127, %129 : vector<1x16xf32>
    %cst_80 = arith.constant 0.000000e+00 : f32
    %131 = vector.broadcast %cst_80 : f32 to vector<1x16xf32>
    %132 = arith.subf %131, %130 : vector<1x16xf32>
    %133 = math.exp %132 : vector<1x16xf32>
    %cst_81 = arith.constant 1.000000e+00 : f32
    %134 = vector.broadcast %cst_81 : f32 to vector<1x16xf32>
    %135 = arith.addf %134, %133 : vector<1x16xf32>
    %cst_82 = arith.constant 1.000000e+00 : f32
    %136 = vector.broadcast %cst_82 : f32 to vector<1x16xf32>
    %137 = arith.divf %136, %135 : vector<1x16xf32>
    %c0_83 = arith.constant 0 : index
    %c0_84 = arith.constant 0 : index
    %138 = vector.load %arg16[%c0_83, %c0_84] : memref<1x16xf32, #tpu.memory_space<vmem>>, vector<1x16xf32>
    tpu.vector_store %arg16[%c0_83, %c0_84], %137 {strides = array<i32>} : memref<1x16xf32, #tpu.memory_space<vmem>>, vector<1x16xf32>,
    return
  }
}

</mosaic_0001>

<llo_original>
// kernel: tpu_custom_call.1
$region0: #{tpu_custom_call.1}
  #allocation0 [shape = 'u32[]', space=smem, size = 0x4, offset = 0x4, fixed_abs, tag = 'smem constant byte address 0x4 - core index']
  #allocation1 [shape = 'u32[144,128]{1,0:T(1,128)}', space=vmem, size = 0x12000, scoped, tag = 'internal scratch']
  #allocation2 [shape = 'f32[16,128]{1,0:T(8,128)}', space=vmem, size = 0x2000, scoped, tag = 'scratch operand']
  #allocation3 [shape = 'f32[1,1]{1,0:T(1,128)S(1)}', space=vmem, size = 0x200, scoped, tag = 'scoped memory for tpu_custom_call.1']
  %s0 = inlined_call_operand.hbm [shape: f32[16,128], index: 0, kind: input, shape index: {}]
  %s1 = inlined_call_operand.hbm [shape: s8[16,16], index: 1, kind: input, shape index: {}]
  %s2 = inlined_call_operand.hbm [shape: f32[128,128], index: 2, kind: input, shape index: {}]
  %s3 = inlined_call_operand.vmem [shape: f32[1,128], index: 3, kind: input, shape index: {}]
  %s4 = inlined_call_operand.vmem [shape: f32[1,128], index: 4, kind: input, shape index: {}]
  %s5 = inlined_call_operand.vmem [shape: f32[1,128], index: 5, kind: input, shape index: {}]
  %s6 = inlined_call_operand.hbm [shape: f32[128,128], index: 6, kind: input, shape index: {}]
  %s7 = inlined_call_operand.vmem [shape: f32[1,128], index: 7, kind: input, shape index: {}]
  %s8 = inlined_call_operand.vmem [shape: f32[1,128], index: 8, kind: input, shape index: {}]
  %s9 = inlined_call_operand.vmem [shape: f32[1,128], index: 9, kind: input, shape index: {}]
  %s10 = inlined_call_operand.hbm [shape: f32[128,128], index: 10, kind: input, shape index: {}]
  %s11 = inlined_call_operand.vmem [shape: f32[1,128], index: 11, kind: input, shape index: {}]
  %s12 = inlined_call_operand.vmem [shape: f32[1,128], index: 12, kind: input, shape index: {}]
  %s13 = inlined_call_operand.vmem [shape: f32[1,128], index: 13, kind: input, shape index: {}]
  %s14 = inlined_call_operand.vmem [shape: f32[1,128], index: 14, kind: input, shape index: {}]
  %s15 = inlined_call_operand.<no memory space> [shape: f32[1,1], index: 15, kind: input, shape index: {}]
  %s16 = inlined_call_operand.hbm [shape: f32[1,16], index: 16, kind: output, shape index: {}]
  %s17 = sld [smem:[#allocation0]]
  $region94: #{tpu_custom_call.1} parent=0
    _
  %s19 = ssub.s32 1, %s17
  %s20 = scalar_select 0, %s19, %s17
  %v21 = vstv %s15
  %22 = vst [vmem:[#allocation3] sm:$0x1] %v21
  $region1: #{tpu_custom_call.1} parent=0
    #allocation4 [shape = 'u8[8192]{0}', space=vmem, size = 0x2000, scoped, tag = 'input window, operand 0, single buffered']
    #allocation5 [shape = 's32[1]{0}', space=sflag, size = 0x4, scoped, tag = 'scoped memory for tpu_custom_call.1']
    #allocation6 [shape = 's32[1]{0}', space=sflag, size = 0x4, scoped, tag = 'scoped memory for tpu_custom_call.1']
    #allocation7 [shape = 'u8[2048]{0}', space=vmem, size = 0x800, scoped, tag = 'input window, operand 1, single buffered']
    #allocation8 [shape = 's32[1]{0}', space=sflag, size = 0x4, scoped, tag = 'scoped memory for tpu_custom_call.1']
    #allocation9 [shape = 'u8[65536]{0}', space=vmem, size = 0x10000, scoped, tag = 'input window, operand 2, single buffered']
    #allocation10 [shape = 'u8[65536]{0}', space=vmem, size = 0x10000, scoped, tag = 'input window, operand 6, single buffered']
    #allocation11 [shape = 's32[1]{0}', space=sflag, size = 0x4, scoped, tag = 'scoped memory for tpu_custom_call.1']
    #allocation12 [shape = 'u8[65536]{0}', space=vmem, size = 0x10000, scoped, tag = 'input window, operand 10, single buffered']
    #allocation13 [shape = 'u8[512]{0}', space=vmem, size = 0x400, scoped, tag = 'output window, operand 0, single buffered']
    %23 = vsyncpa [#allocation5], 0
    %24 = vsyncpa [#allocation8], 0
    %25 = vsyncpa [#allocation11], 0
    %26 = vsyncpa [#allocation6], 0
    // Predicated region
    $region2: #{tpu_custom_call.1} parent=1 // pred_check
      _
    $region3: #{tpu_custom_call.1} parent=1 // pred_check_branch
      %28 = sbr.rel (0) target = $region5
    $region4: #{tpu_custom_call.1} parent=1 // pred_region
      %s30 = ssub.s32 256, 256
      %31 = vsyncadd [#allocation5], %s30
      %s32 = sshll.u32 [#allocation4], 4
      %s33 = int_to_ptr.vmem [resolvable:$true] %s32
      %38 = dma.hbm_to_vmem [thread:$0]  %s0, 256, %s33, [#allocation5], 128, 128, 8
    $region5: #{tpu_custom_call.1} parent=1 // pred_fallthru
      _
    // Predicated region
    $region6: #{tpu_custom_call.1} parent=1 // pred_check
      _
    $region7: #{tpu_custom_call.1} parent=1 // pred_check_branch
      %40 = sbr.rel (0) target = $region9
    $region8: #{tpu_custom_call.1} parent=1 // pred_region
      %s42 = ssub.s32 64, 64
      %43 = vsyncadd [#allocation8], %s42
      %s44 = sshll.u32 [#allocation7], 4
      %s45 = int_to_ptr.vmem [resolvable:$true] %s44
      %50 = dma.hbm_to_vmem [thread:$0]  %s1, 64, %s45, [#allocation8], 32, 32, 2
    $region9: #{tpu_custom_call.1} parent=1 // pred_fallthru
      _
    // Predicated region
    $region10: #{tpu_custom_call.1} parent=1 // pred_check
      _
    $region11: #{tpu_custom_call.1} parent=1 // pred_check_branch
      %52 = sbr.rel (0) target = $region13
    $region12: #{tpu_custom_call.1} parent=1 // pred_region
      %s54 = ssub.s32 2048, 2048
      %55 = vsyncadd [#allocation8], %s54
      %s56 = sshll.u32 [#allocation9], 4
      %s57 = int_to_ptr.vmem [resolvable:$true] %s56
      %62 = dma.hbm_to_vmem [thread:$0]  %s2, 2048, %s57, [#allocation8], 128, 128, 8
    $region13: #{tpu_custom_call.1} parent=1 // pred_fallthru
      _
    // Predicated region
    $region14: #{tpu_custom_call.1} parent=1 // pred_check
      _
    $region15: #{tpu_custom_call.1} parent=1 // pred_check_branch
      %64 = sbr.rel (0) target = $region17
    $region16: #{tpu_custom_call.1} parent=1 // pred_region
      _
    $region17: #{tpu_custom_call.1} parent=1 // pred_fallthru
      _
    // Predicated region
    $region18: #{tpu_custom_call.1} parent=1 // pred_check
      _
    $region19: #{tpu_custom_call.1} parent=1 // pred_check_branch
      %66 = sbr.rel (0) target = $region21
    $region20: #{tpu_custom_call.1} parent=1 // pred_region
      _
    $region21: #{tpu_custom_call.1} parent=1 // pred_fallthru
      _
    // Predicated region
    $region22: #{tpu_custom_call.1} parent=1 // pred_check
      _
    $region23: #{tpu_custom_call.1} parent=1 // pred_check_branch
      %68 = sbr.rel (0) target = $region25
    $region24: #{tpu_custom_call.1} parent=1 // pred_region
      _
    $region25: #{tpu_custom_call.1} parent=1 // pred_fallthru
      _
    // Predicated region
    $region26: #{tpu_custom_call.1} parent=1 // pred_check
      _
    $region27: #{tpu_custom_call.1} parent=1 // pred_check_branch
      %70 = sbr.rel (0) target = $region29
    $region28: #{tpu_custom_call.1} parent=1 // pred_region
      %s72 = ssub.s32 2048, 2048
      %73 = vsyncadd [#allocation11], %s72
      %s74 = sshll.u32 [#allocation10], 4
      %s75 = int_to_ptr.vmem [resolvable:$true] %s74
      %80 = dma.hbm_to_vmem [thread:$0]  %s6, 2048, %s75, [#allocation11], 128, 128, 8
    $region29: #{tpu_custom_call.1} parent=1 // pred_fallthru
      _
    // Predicated region
    $region30: #{tpu_custom_call.1} parent=1 // pred_check
      _
    $region31: #{tpu_custom_call.1} parent=1 // pred_check_branch
      %82 = sbr.rel (0) target = $region33
    $region32: #{tpu_custom_call.1} parent=1 // pred_region
      _
    $region33: #{tpu_custom_call.1} parent=1 // pred_fallthru
      _
    // Predicated region
    $region34: #{tpu_custom_call.1} parent=1 // pred_check
      _
    $region35: #{tpu_custom_call.1} parent=1 // pred_check_branch
      %84 = sbr.rel (0) target = $region37
    $region36: #{tpu_custom_call.1} parent=1 // pred_region
      _
    $region37: #{tpu_custom_call.1} parent=1 // pred_fallthru
      _
    // Predicated region
    $region38: #{tpu_custom_call.1} parent=1 // pred_check
      _
    $region39: #{tpu_custom_call.1} parent=1 // pred_check_branch
      %86 = sbr.rel (0) target = $region41
    $region40: #{tpu_custom_call.1} parent=1 // pred_region
      _
    $region41: #{tpu_custom_call.1} parent=1 // pred_fallthru
      _
    // Predicated region
    $region42: #{tpu_custom_call.1} parent=1 // pred_check
      _
    $region43: #{tpu_custom_call.1} parent=1 // pred_check_branch
      %88 = sbr.rel (0) target = $region45
    $region44: #{tpu_custom_call.1} parent=1 // pred_region
      %s90 = ssub.s32 2048, 2048
      %91 = vsyncadd [#allocation11], %s90
      %s92 = sshll.u32 [#allocation12], 4
      %s93 = int_to_ptr.vmem [resolvable:$true] %s92
      %98 = dma.hbm_to_vmem [thread:$0]  %s10, 2048, %s93, [#allocation11], 128, 128, 8
    $region45: #{tpu_custom_call.1} parent=1 // pred_fallthru
      _
    // Predicated region
    $region46: #{tpu_custom_call.1} parent=1 // pred_check
      _
    $region47: #{tpu_custom_call.1} parent=1 // pred_check_branch
      %100 = sbr.rel (0) target = $region49
    $region48: #{tpu_custom_call.1} parent=1 // pred_region
      _
    $region49: #{tpu_custom_call.1} parent=1 // pred_fallthru
      _
    // Predicated region
    $region50: #{tpu_custom_call.1} parent=1 // pred_check
      _
    $region51: #{tpu_custom_call.1} parent=1 // pred_check_branch
      %102 = sbr.rel (0) target = $region53
    $region52: #{tpu_custom_call.1} parent=1 // pred_region
      _
    $region53: #{tpu_custom_call.1} parent=1 // pred_fallthru
      _
    // Predicated region
    $region54: #{tpu_custom_call.1} parent=1 // pred_check
      _
    $region55: #{tpu_custom_call.1} parent=1 // pred_check_branch
      %104 = sbr.rel (0) target = $region57
    $region56: #{tpu_custom_call.1} parent=1 // pred_region
      _
    $region57: #{tpu_custom_call.1} parent=1 // pred_fallthru
      _
    // Predicated region
    $region58: #{tpu_custom_call.1} parent=1 // pred_check
      _
    $region59: #{tpu_custom_call.1} parent=1 // pred_check_branch
      %106 = sbr.rel (0) target = $region61
    $region60: #{tpu_custom_call.1} parent=1 // pred_region
      _
    $region61: #{tpu_custom_call.1} parent=1 // pred_fallthru
      _
    // Predicated region
    $region62: #{tpu_custom_call.1} parent=1 // pred_check
      _
    $region63: #{tpu_custom_call.1} parent=1 // pred_check_branch
      %108 = sbr.rel (0) target = $region65
    $region64: #{tpu_custom_call.1} parent=1 // pred_region
      _
    $region65: #{tpu_custom_call.1} parent=1 // pred_fallthru
      _
    // Predicated region
    $region66: #{tpu_custom_call.1} parent=1 // pred_check
      _
    $region67: #{tpu_custom_call.1} parent=1 // pred_check_branch
      %110 = sbr.rel (0) target = $region69
    $region68: #{tpu_custom_call.1} parent=1 // pred_region
      %111 = dma.done [#allocation5], 256
    $region69: #{tpu_custom_call.1} parent=1 // pred_fallthru
      _
    // Predicated region
    $region70: #{tpu_custom_call.1} parent=1 // pred_check
      _
    $region71: #{tpu_custom_call.1} parent=1 // pred_check_branch
      %113 = sbr.rel (0) target = $region73
    $region72: #{tpu_custom_call.1} parent=1 // pred_region
      %114 = dma.done [#allocation8], 64
    $region73: #{tpu_custom_call.1} parent=1 // pred_fallthru
      _
    // Predicated region
    $region74: #{tpu_custom_call.1} parent=1 // pred_check
      _
    $region75: #{tpu_custom_call.1} parent=1 // pred_check_branch
      %116 = sbr.rel (0) target = $region77
    $region76: #{tpu_custom_call.1} parent=1 // pred_region
      %117 = dma.done [#allocation8], 2048
    $region77: #{tpu_custom_call.1} parent=1 // pred_fallthru
      _
    // Predicated region
    $region78: #{tpu_custom_call.1} parent=1 // pred_check
      _
    $region79: #{tpu_custom_call.1} parent=1 // pred_check_branch
      %119 = sbr.rel (0) target = $region81
    $region80: #{tpu_custom_call.1} parent=1 // pred_region
      %120 = dma.done [#allocation11], 2048
    $region81: #{tpu_custom_call.1} parent=1 // pred_fallthru
      _
    // Predicated region
    $region82: #{tpu_custom_call.1} parent=1 // pred_check
      _
    $region83: #{tpu_custom_call.1} parent=1 // pred_check_branch
      %122 = sbr.rel (0) target = $region85
    $region84: #{tpu_custom_call.1} parent=1 // pred_region
      %123 = dma.done [#allocation11], 2048
    $region85: #{tpu_custom_call.1} parent=1 // pred_fallthru
      _
    %v127 = vld [vmem:[#allocation7] sm:$0x3]
    %v128 = vld [vmem:[#allocation7 + $0x2] sm:$0x3]
    %vm129 = vnez %v127
    %vm130 = vnez %v128
    %v131 = vld [vmem:[#allocation4] sm:$0xff]
    %v132 = vld [vmem:[#allocation4 + $0x8] sm:$0xff]
    %133 = vst [vmem:[#allocation2] sm:$0xff] %v131
    %134 = vst [vmem:[#allocation2 + $0x8] sm:$0xff] %v132
    %v135 = vld [vmem:[#allocation2] sm:$0xff]
    %v136 = vld [vmem:[#allocation2 + $0x8] sm:$0xff]
    %v137 = vld [vmem:[#allocation9] sm:$0xff]
    %v138 = vld [vmem:[#allocation9 + $0x8] sm:$0xff]
    %v139 = vld [vmem:[#allocation9 + $0x10] sm:$0xff]
    %v140 = vld [vmem:[#allocation9 + $0x18] sm:$0xff]
    %v141 = vld [vmem:[#allocation9 + $0x20] sm:$0xff]
    %v142 = vld [vmem:[#allocation9 + $0x28] sm:$0xff]
    %v143 = vld [vmem:[#allocation9 + $0x30] sm:$0xff]
    %v144 = vld [vmem:[#allocation9 + $0x38] sm:$0xff]
    %v145 = vld [vmem:[#allocation9 + $0x40] sm:$0xff]
    %v146 = vld [vmem:[#allocation9 + $0x48] sm:$0xff]
    %v147 = vld [vmem:[#allocation9 + $0x50] sm:$0xff]
    %v148 = vld [vmem:[#allocation9 + $0x58] sm:$0xff]
    %v149 = vld [vmem:[#allocation9 + $0x60] sm:$0xff]
    %v150 = vld [vmem:[#allocation9 + $0x68] sm:$0xff]
    %v151 = vld [vmem:[#allocation9 + $0x70] sm:$0xff]
    %v152 = vld [vmem:[#allocation9 + $0x78] sm:$0xff]
    %153 = vmatprep.subr.mxu0 0.0
    %154 = vmatpush1.msra.mxu0 %v152
    %155 = vmatprep.subr.mxu0 0.0
    %156 = vmatpush1.msra.mxu0 %v151
    %157 = vmatprep.subr.mxu0 0.0
    %158 = vmatpush1.msra.mxu0 %v150
    %159 = vmatprep.subr.mxu0 0.0
    %160 = vmatpush1.msra.mxu0 %v149
    %161 = vmatprep.subr.mxu0 0.0
    %162 = vmatpush1.msra.mxu0 %v148
    %163 = vmatprep.subr.mxu0 0.0
    %164 = vmatpush1.msra.mxu0 %v147
    %165 = vmatprep.subr.mxu0 0.0
    %166 = vmatpush1.msra.mxu0 %v146
    %167 = vmatprep.subr.mxu0 0.0
    %168 = vmatpush1.msra.mxu0 %v145
    %169 = vmatprep.subr.mxu0 0.0
    %170 = vmatpush1.msra.mxu0 %v144
    %171 = vmatprep.subr.mxu0 0.0
    %172 = vmatpush1.msra.mxu0 %v143
    %173 = vmatprep.subr.mxu0 0.0
    %174 = vmatpush1.msra.mxu0 %v142
    %175 = vmatprep.subr.mxu0 0.0
    %176 = vmatpush1.msra.mxu0 %v141
    %177 = vmatprep.subr.mxu0 0.0
    %178 = vmatpush1.msra.mxu0 %v140
    %179 = vmatprep.subr.mxu0 0.0
    %180 = vmatpush1.msra.mxu0 %v139
    %181 = vmatprep.subr.mxu0 0.0
    %182 = vmatpush1.msra.mxu0 %v138
    %183 = vmatprep.subr.mxu0 0.0
    %184 = vmatpush1.msra.mxu0 %v137
    %185 = vmatprep.subr.mxu0 0.0
    %186 = vmatpush2.msra.mxu0 0.0
    %187 = vmatprep.subr.mxu0 0.0
    %188 = vmatpush2.msra.mxu0 0.0
    %189 = vmatprep.subr.mxu0 0.0
    %190 = vmatpush2.msra.mxu0 0.0
    %191 = vmatprep.subr.mxu0 0.0
    %192 = vmatpush2.msra.mxu0 0.0
    %193 = vmatprep.subr.mxu0 0.0
    %194 = vmatpush2.msra.mxu0 0.0
    %195 = vmatprep.subr.mxu0 0.0
    %196 = vmatpush2.msra.mxu0 0.0
    %197 = vmatprep.subr.mxu0 0.0
    %198 = vmatpush2.msra.mxu0 0.0
    %199 = vmatprep.subr.mxu0 0.0
    %200 = vmatpush2.msra.mxu0 0.0
    %201 = vmatprep.subr.mxu0 0.0
    %202 = vmatpush2.msra.mxu0 0.0
    %203 = vmatprep.subr.mxu0 0.0
    %204 = vmatpush2.msra.mxu0 0.0
    %205 = vmatprep.subr.mxu0 0.0
    %206 = vmatpush2.msra.mxu0 0.0
    %207 = vmatprep.subr.mxu0 0.0
    %208 = vmatpush2.msra.mxu0 0.0
    %209 = vmatprep.subr.mxu0 0.0
    %210 = vmatpush2.msra.mxu0 0.0
    %211 = vmatprep.subr.mxu0 0.0
    %212 = vmatpush2.msra.mxu0 0.0
    %213 = vmatprep.subr.mxu0 0.0
    %214 = vmatpush2.msra.mxu0 0.0
    %215 = vmatprep.subr.mxu0 0.0
    %216 = vmatpush2.msra.mxu0 0.0
    %217 = vmatprep.mubr.f32.mxu0 0.0
    %218 = vmatmul.mubr.f32.gmra.mxu0 %v135
    %v219 = vpop.f32.mrf.mxu0
    %v220 = vadd.f32 0.0, %v219
    %v221 = vpop.f32.mrf.mxu0
    %222 = vmatprep.mubr.f32.mxu0 0.0
    %223 = vmatmul.mubr.f32.gmra.mxu0 %v136
    %v224 = vpop.f32.mrf.mxu0
    %v225 = vadd.f32 0.0, %v224
    %v226 = vpop.f32.mrf.mxu0
    %227 = vdwg.mxu0
    %v228 = vld [vmem:[%s4] sm:$0x1]
    %v230 = vlaneseq
    %v231 = vshrl.u32 %v230, 7
    %v232 = vsub.s32 0, %v231
    %v233 = vrot.slane %v228, %v232
    %v235 = vmul.f32 %v220, %v233
    %v236 = vmul.f32 %v225, %v233
    %237 = vadd.xlane.f32.xlu0 %v235
    %v238 = vpop.xlane.xlu0 %237
    %239 = vadd.xlane.f32.xlu0 %v236
    %v240 = vpop.xlane.xlu0 %239
    %v241 = vld [vmem:[%s3] sm:$0x1]
    %242 = vmatprep.subr.mxu0 0.0
    %243 = vmatpush1.xpose.msra.mxu0 0.0
    %244 = vmatprep.subr.mxu0 0.0
    %245 = vmatpush1.xpose.msra.mxu0 0.0
    %246 = vmatprep.subr.mxu0 0.0
    %247 = vmatpush1.xpose.msra.mxu0 0.0
    %248 = vmatprep.subr.mxu0 0.0
    %249 = vmatpush1.xpose.msra.mxu0 0.0
    %250 = vmatprep.subr.mxu0 0.0
    %251 = vmatpush1.xpose.msra.mxu0 0.0
    %252 = vmatprep.subr.mxu0 0.0
    %253 = vmatpush1.xpose.msra.mxu0 0.0
    %254 = vmatprep.subr.mxu0 0.0
    %255 = vmatpush1.xpose.msra.mxu0 0.0
    %256 = vmatprep.subr.mxu0 0.0
    %257 = vmatpush1.xpose.msra.mxu0 0.0
    %258 = vmatprep.subr.mxu0 0.0
    %259 = vmatpush1.xpose.msra.mxu0 0.0
    %260 = vmatprep.subr.mxu0 0.0
    %261 = vmatpush1.xpose.msra.mxu0 0.0
    %262 = vmatprep.subr.mxu0 0.0
    %263 = vmatpush1.xpose.msra.mxu0 0.0
    %264 = vmatprep.subr.mxu0 0.0
    %265 = vmatpush1.xpose.msra.mxu0 0.0
    %266 = vmatprep.subr.mxu0 0.0
    %267 = vmatpush1.xpose.msra.mxu0 0.0
    %268 = vmatprep.subr.mxu0 0.0
    %269 = vmatpush1.xpose.msra.mxu0 0.0
    %270 = vmatprep.subr.mxu0 0.0
    %271 = vmatpush1.xpose.msra.mxu0 %v225
    %272 = vmatprep.subr.mxu0 0.0
    %273 = vmatpush1.xpose.msra.mxu0 %v220
    %274 = vmatprep.subr.mxu0 0.0
    %275 = vmatpush2.xpose.msra.mxu0 0.0
    %276 = vmatprep.subr.mxu0 0.0
    %277 = vmatpush2.xpose.msra.mxu0 0.0
    %278 = vmatprep.subr.mxu0 0.0
    %279 = vmatpush2.xpose.msra.mxu0 0.0
    %280 = vmatprep.subr.mxu0 0.0
    %281 = vmatpush2.xpose.msra.mxu0 0.0
    %282 = vmatprep.subr.mxu0 0.0
    %283 = vmatpush2.xpose.msra.mxu0 0.0
    %284 = vmatprep.subr.mxu0 0.0
    %285 = vmatpush2.xpose.msra.mxu0 0.0
    %286 = vmatprep.subr.mxu0 0.0
    %287 = vmatpush2.xpose.msra.mxu0 0.0
    %288 = vmatprep.subr.mxu0 0.0
    %289 = vmatpush2.xpose.msra.mxu0 0.0
    %290 = vmatprep.subr.mxu0 0.0
    %291 = vmatpush2.xpose.msra.mxu0 0.0
    %292 = vmatprep.subr.mxu0 0.0
    %293 = vmatpush2.xpose.msra.mxu0 0.0
    %294 = vmatprep.subr.mxu0 0.0
    %295 = vmatpush2.xpose.msra.mxu0 0.0
    %296 = vmatprep.subr.mxu0 0.0
    %297 = vmatpush2.xpose.msra.mxu0 0.0
    %298 = vmatprep.subr.mxu0 0.0
    %299 = vmatpush2.xpose.msra.mxu0 0.0
    %300 = vmatprep.subr.mxu0 0.0
    %301 = vmatpush2.xpose.msra.mxu0 0.0
    %302 = vmatprep.subr.mxu0 0.0
    %303 = vmatpush2.xpose.msra.mxu0 0.0
    %304 = vmatprep.subr.mxu0 0.0
    %305 = vmatpush2.xpose.msra.mxu0 0.0
    %306 = vmatprep.mubr.f32.mxu0 0.0
    %307 = vmatmul.mubr.f32.gmra.mxu0 %v241
    %v308 = vpop.f32.mrf.mxu0
    %v309 = vadd.f32 0.0, %v308
    %v310 = vpop.f32.mrf.mxu0
    %311 = vdwg.mxu0
    %v312 = vlaneseq
    %v313 = vshrl.u32 %v312, 7
    %v314 = vsub.s32 0, %v313
    %v315 = vrot.slane %v309, %v314
    %v316 = vadd.f32 %v238, %v315
    %v317 = vadd.f32 %v240, %v315
    %vm318 = vcmp.gt.f32.partialorder %v316, 0.0
    %vm319 = vcmp.gt.f32.partialorder %v317, 0.0
    %v320 = vmul.f32 %v316, 0.2
    %v321 = vmul.f32 %v317, 0.2
    %v322 = vsel %vm318, %v316, %v320
    %v323 = vsel %vm319, %v317, %v321
    %v324 = vsel %vm129, 16843009, 0
    %v325 = vsel %vm130, 16843009, 0
    %v326 = vunpack.c.0.s8 %v324
    %v327 = vunpack.c.0.s8 %v325
    %vm328 = vcmp.ne.s32.totalorder %v326, 0
    %vm329 = vcmp.ne.s32.totalorder %v327, 0
    %v330 = vsel %vm328, %v322, -1e+30
    %v331 = vsel %vm329, %v323, -1e+30
    %vm332 = vcmask 130048
    %v333 = vsel %vm332, %v330, -inf
    %334 = vmax.xlane.f32.xlu0 %v333
    %v335 = vpop.xlane.xlu0 %334
    %v336 = vsel %vm332, %v331, -inf
    %337 = vmax.xlane.f32.xlu0 %v336
    %v338 = vpop.xlane.xlu0 %337
    %v339 = vsub.f32 %v330, %v335
    %v340 = vsub.f32 %v331, %v338
    %v341 = vmul.f32 %v339, 1.442695
    %v342 = vpow.pop %v341
    %v343 = vmul.f32 %v340, 1.442695
    %v344 = vpow.pop %v343
    %v345 = vsel %vm332, %v342, 0.0
    %346 = vadd.xlane.f32.xlu0 %v345
    %v347 = vpop.xlane.xlu0 %346
    %v348 = vsel %vm332, %v344, 0.0
    %349 = vadd.xlane.f32.xlu0 %v348
    %v350 = vpop.xlane.xlu0 %349
    %v351 = vrcp.pop %v347
    %v352 = vrcp.pop %v350
    %v353 = vmul.f32 %v342, %v351
    %v354 = vmul.f32 %v344, %v352
    %v355 = vpack.c.bf16 %v354, %v353
    %v356 = vpack.c.bf16 %v225, %v220
    %v357 = vld [vmem:[%s5] sm:$0x1]
    %v359 = vlaneseq
    %v360 = vshrl.u32 %v359, 7
    %v361 = vsub.s32 0, %v360
    %v362 = vrot.slane %v357, %v361
    %v365 = vsel %vm332, %v355, 0
    %367 = vmatprep.subr.bf16.mxu0 0
    %368 = vmatpush1.bf16.msra.mxu0 0
    %369 = vmatprep.subr.bf16.mxu0 0
    %370 = vmatpush1.bf16.msra.mxu0 0
    %371 = vmatprep.subr.bf16.mxu0 0
    %372 = vmatpush1.bf16.msra.mxu0 0
    %373 = vmatprep.subr.bf16.mxu0 0
    %374 = vmatpush1.bf16.msra.mxu0 0
    %375 = vmatprep.subr.bf16.mxu0 0
    %376 = vmatpush1.bf16.msra.mxu0 0
    %377 = vmatprep.subr.bf16.mxu0 0
    %378 = vmatpush1.bf16.msra.mxu0 0
    %379 = vmatprep.subr.bf16.mxu0 0
    %380 = vmatpush1.bf16.msra.mxu0 0
    %381 = vmatprep.subr.bf16.mxu0 0
    %382 = vmatpush1.bf16.msra.mxu0 %v356
    %383 = vmatprep.subr.bf16.mxu0 0
    %384 = vmatpush2.bf16.msra.mxu0 0
    %385 = vmatprep.subr.bf16.mxu0 0
    %386 = vmatpush2.bf16.msra.mxu0 0
    %387 = vmatprep.subr.bf16.mxu0 0
    %388 = vmatpush2.bf16.msra.mxu0 0
    %389 = vmatprep.subr.bf16.mxu0 0
    %390 = vmatpush2.bf16.msra.mxu0 0
    %391 = vmatprep.subr.bf16.mxu0 0
    %392 = vmatpush2.bf16.msra.mxu0 0
    %393 = vmatprep.subr.bf16.mxu0 0
    %394 = vmatpush2.bf16.msra.mxu0 0
    %395 = vmatprep.subr.bf16.mxu0 0
    %396 = vmatpush2.bf16.msra.mxu0 0
    %397 = vmatprep.subr.bf16.mxu0 0
    %398 = vmatpush2.bf16.msra.mxu0 0
    %399 = vmatprep.mubr.bf16.mxu0 0
    %400 = vmatmul.mubr.bf16.gmra.mxu0 %v365
    %v401 = vpop.f32.mrf.mxu0
    %v402 = vadd.f32 %v362, %v401
    %v403 = vpop.f32.mrf.mxu0
    %v404 = vpop.f32.mrf.mxu0
    %v405 = vadd.f32 %v362, %v404
    %v406 = vpop.f32.mrf.mxu0
    %407 = vdwg.mxu0
    %vm408 = vcmp.gt.f32.partialorder %v402, 0.0
    %vm409 = vcmp.gt.f32.partialorder %v405, 0.0
    %v410 = vmul.f32 %v402, 1.442695
    %v411 = vpow.pop %v410
    %v412 = vmul.f32 %v405, 1.442695
    %v413 = vpow.pop %v412
    %v414 = vsub.f32 %v411, 1.0
    %v415 = vsub.f32 %v413, 1.0
    %v416 = vsel %vm408, %v402, %v414
    %v417 = vsel %vm409, %v405, %v415
    %418 = vst [vmem:[#allocation2] sm:$0xff] %v416
    %419 = vst [vmem:[#allocation2 + $0x8] sm:$0xff] %v417
    %v420 = vld [vmem:[#allocation2] sm:$0xff]
    %v421 = vld [vmem:[#allocation2 + $0x8] sm:$0xff]
    %v422 = vld [vmem:[#allocation10] sm:$0xff]
    %v423 = vld [vmem:[#allocation10 + $0x8] sm:$0xff]
    %v424 = vld [vmem:[#allocation10 + $0x10] sm:$0xff]
    %v425 = vld [vmem:[#allocation10 + $0x18] sm:$0xff]
    %v426 = vld [vmem:[#allocation10 + $0x20] sm:$0xff]
    %v427 = vld [vmem:[#allocation10 + $0x28] sm:$0xff]
    %v428 = vld [vmem:[#allocation10 + $0x30] sm:$0xff]
    %v429 = vld [vmem:[#allocation10 + $0x38] sm:$0xff]
    %v430 = vld [vmem:[#allocation10 + $0x40] sm:$0xff]
    %v431 = vld [vmem:[#allocation10 + $0x48] sm:$0xff]
    %v432 = vld [vmem:[#allocation10 + $0x50] sm:$0xff]
    %v433 = vld [vmem:[#allocation10 + $0x58] sm:$0xff]
    %v434 = vld [vmem:[#allocation10 + $0x60] sm:$0xff]
    %v435 = vld [vmem:[#allocation10 + $0x68] sm:$0xff]
    %v436 = vld [vmem:[#allocation10 + $0x70] sm:$0xff]
    %v437 = vld [vmem:[#allocation10 + $0x78] sm:$0xff]
    %438 = vmatprep.subr.mxu0 0.0
    %439 = vmatpush1.msra.mxu0 %v437
    %440 = vmatprep.subr.mxu0 0.0
    %441 = vmatpush1.msra.mxu0 %v436
    %442 = vmatprep.subr.mxu0 0.0
    %443 = vmatpush1.msra.mxu0 %v435
    %444 = vmatprep.subr.mxu0 0.0
    %445 = vmatpush1.msra.mxu0 %v434
    %446 = vmatprep.subr.mxu0 0.0
    %447 = vmatpush1.msra.mxu0 %v433
    %448 = vmatprep.subr.mxu0 0.0
    %449 = vmatpush1.msra.mxu0 %v432
    %450 = vmatprep.subr.mxu0 0.0
    %451 = vmatpush1.msra.mxu0 %v431
    %452 = vmatprep.subr.mxu0 0.0
    %453 = vmatpush1.msra.mxu0 %v430
    %454 = vmatprep.subr.mxu0 0.0
    %455 = vmatpush1.msra.mxu0 %v429
    %456 = vmatprep.subr.mxu0 0.0
    %457 = vmatpush1.msra.mxu0 %v428
    %458 = vmatprep.subr.mxu0 0.0
    %459 = vmatpush1.msra.mxu0 %v427
    %460 = vmatprep.subr.mxu0 0.0
    %461 = vmatpush1.msra.mxu0 %v426
    %462 = vmatprep.subr.mxu0 0.0
    %463 = vmatpush1.msra.mxu0 %v425
    %464 = vmatprep.subr.mxu0 0.0
    %465 = vmatpush1.msra.mxu0 %v424
    %466 = vmatprep.subr.mxu0 0.0
    %467 = vmatpush1.msra.mxu0 %v423
    %468 = vmatprep.subr.mxu0 0.0
    %469 = vmatpush1.msra.mxu0 %v422
    %470 = vmatprep.subr.mxu0 0.0
    %471 = vmatpush2.msra.mxu0 0.0
    %472 = vmatprep.subr.mxu0 0.0
    %473 = vmatpush2.msra.mxu0 0.0
    %474 = vmatprep.subr.mxu0 0.0
    %475 = vmatpush2.msra.mxu0 0.0
    %476 = vmatprep.subr.mxu0 0.0
    %477 = vmatpush2.msra.mxu0 0.0
    %478 = vmatprep.subr.mxu0 0.0
    %479 = vmatpush2.msra.mxu0 0.0
    %480 = vmatprep.subr.mxu0 0.0
    %481 = vmatpush2.msra.mxu0 0.0
    %482 = vmatprep.subr.mxu0 0.0
    %483 = vmatpush2.msra.mxu0 0.0
    %484 = vmatprep.subr.mxu0 0.0
    %485 = vmatpush2.msra.mxu0 0.0
    %486 = vmatprep.subr.mxu0 0.0
    %487 = vmatpush2.msra.mxu0 0.0
    %488 = vmatprep.subr.mxu0 0.0
    %489 = vmatpush2.msra.mxu0 0.0
    %490 = vmatprep.subr.mxu0 0.0
    %491 = vmatpush2.msra.mxu0 0.0
    %492 = vmatprep.subr.mxu0 0.0
    %493 = vmatpush2.msra.mxu0 0.0
    %494 = vmatprep.subr.mxu0 0.0
    %495 = vmatpush2.msra.mxu0 0.0
    %496 = vmatprep.subr.mxu0 0.0
    %497 = vmatpush2.msra.mxu0 0.0
    %498 = vmatprep.subr.mxu0 0.0
    %499 = vmatpush2.msra.mxu0 0.0
    %500 = vmatprep.subr.mxu0 0.0
    %501 = vmatpush2.msra.mxu0 0.0
    %502 = vmatprep.mubr.f32.mxu0 0.0
    %503 = vmatmul.mubr.f32.gmra.mxu0 %v420
    %v504 = vpop.f32.mrf.mxu0
    %v505 = vadd.f32 0.0, %v504
    %v506 = vpop.f32.mrf.mxu0
    %507 = vmatprep.mubr.f32.mxu0 0.0
    %508 = vmatmul.mubr.f32.gmra.mxu0 %v421
    %v509 = vpop.f32.mrf.mxu0
    %v510 = vadd.f32 0.0, %v509
    %v511 = vpop.f32.mrf.mxu0
    %512 = vdwg.mxu0
    %v513 = vld [vmem:[%s8] sm:$0x1]
    %v515 = vlaneseq
    %v516 = vshrl.u32 %v515, 7
    %v517 = vsub.s32 0, %v516
    %v518 = vrot.slane %v513, %v517
    %v520 = vmul.f32 %v505, %v518
    %v521 = vmul.f32 %v510, %v518
    %522 = vadd.xlane.f32.xlu0 %v520
    %v523 = vpop.xlane.xlu0 %522
    %524 = vadd.xlane.f32.xlu0 %v521
    %v525 = vpop.xlane.xlu0 %524
    %v526 = vld [vmem:[%s7] sm:$0x1]
    %527 = vmatprep.subr.mxu0 0.0
    %528 = vmatpush1.xpose.msra.mxu0 0.0
    %529 = vmatprep.subr.mxu0 0.0
    %530 = vmatpush1.xpose.msra.mxu0 0.0
    %531 = vmatprep.subr.mxu0 0.0
    %532 = vmatpush1.xpose.msra.mxu0 0.0
    %533 = vmatprep.subr.mxu0 0.0
    %534 = vmatpush1.xpose.msra.mxu0 0.0
    %535 = vmatprep.subr.mxu0 0.0
    %536 = vmatpush1.xpose.msra.mxu0 0.0
    %537 = vmatprep.subr.mxu0 0.0
    %538 = vmatpush1.xpose.msra.mxu0 0.0
    %539 = vmatprep.subr.mxu0 0.0
    %540 = vmatpush1.xpose.msra.mxu0 0.0
    %541 = vmatprep.subr.mxu0 0.0
    %542 = vmatpush1.xpose.msra.mxu0 0.0
    %543 = vmatprep.subr.mxu0 0.0
    %544 = vmatpush1.xpose.msra.mxu0 0.0
    %545 = vmatprep.subr.mxu0 0.0
    %546 = vmatpush1.xpose.msra.mxu0 0.0
    %547 = vmatprep.subr.mxu0 0.0
    %548 = vmatpush1.xpose.msra.mxu0 0.0
    %549 = vmatprep.subr.mxu0 0.0
    %550 = vmatpush1.xpose.msra.mxu0 0.0
    %551 = vmatprep.subr.mxu0 0.0
    %552 = vmatpush1.xpose.msra.mxu0 0.0
    %553 = vmatprep.subr.mxu0 0.0
    %554 = vmatpush1.xpose.msra.mxu0 0.0
    %555 = vmatprep.subr.mxu0 0.0
    %556 = vmatpush1.xpose.msra.mxu0 %v510
    %557 = vmatprep.subr.mxu0 0.0
    %558 = vmatpush1.xpose.msra.mxu0 %v505
    %559 = vmatprep.subr.mxu0 0.0
    %560 = vmatpush2.xpose.msra.mxu0 0.0
    %561 = vmatprep.subr.mxu0 0.0
    %562 = vmatpush2.xpose.msra.mxu0 0.0
    %563 = vmatprep.subr.mxu0 0.0
    %564 = vmatpush2.xpose.msra.mxu0 0.0
    %565 = vmatprep.subr.mxu0 0.0
    %566 = vmatpush2.xpose.msra.mxu0 0.0
    %567 = vmatprep.subr.mxu0 0.0
    %568 = vmatpush2.xpose.msra.mxu0 0.0
    %569 = vmatprep.subr.mxu0 0.0
    %570 = vmatpush2.xpose.msra.mxu0 0.0
    %571 = vmatprep.subr.mxu0 0.0
    %572 = vmatpush2.xpose.msra.mxu0 0.0
    %573 = vmatprep.subr.mxu0 0.0
    %574 = vmatpush2.xpose.msra.mxu0 0.0
    %575 = vmatprep.subr.mxu0 0.0
    %576 = vmatpush2.xpose.msra.mxu0 0.0
    %577 = vmatprep.subr.mxu0 0.0
    %578 = vmatpush2.xpose.msra.mxu0 0.0
    %579 = vmatprep.subr.mxu0 0.0
    %580 = vmatpush2.xpose.msra.mxu0 0.0
    %581 = vmatprep.subr.mxu0 0.0
    %582 = vmatpush2.xpose.msra.mxu0 0.0
    %583 = vmatprep.subr.mxu0 0.0
    %584 = vmatpush2.xpose.msra.mxu0 0.0
    %585 = vmatprep.subr.mxu0 0.0
    %586 = vmatpush2.xpose.msra.mxu0 0.0
    %587 = vmatprep.subr.mxu0 0.0
    %588 = vmatpush2.xpose.msra.mxu0 0.0
    %589 = vmatprep.subr.mxu0 0.0
    %590 = vmatpush2.xpose.msra.mxu0 0.0
    %591 = vmatprep.mubr.f32.mxu0 0.0
    %592 = vmatmul.mubr.f32.gmra.mxu0 %v526
    %v593 = vpop.f32.mrf.mxu0
    %v594 = vadd.f32 0.0, %v593
    %v595 = vpop.f32.mrf.mxu0
    %596 = vdwg.mxu0
    %v597 = vlaneseq
    %v598 = vshrl.u32 %v597, 7
    %v599 = vsub.s32 0, %v598
    %v600 = vrot.slane %v594, %v599
    %v601 = vadd.f32 %v523, %v600
    %v602 = vadd.f32 %v525, %v600
    %vm603 = vcmp.gt.f32.partialorder %v601, 0.0
    %vm604 = vcmp.gt.f32.partialorder %v602, 0.0
    %v605 = vmul.f32 %v601, 0.2
    %v606 = vmul.f32 %v602, 0.2
    %v607 = vsel %vm603, %v601, %v605
    %v608 = vsel %vm604, %v602, %v606
    %v609 = vsel %vm328, %v607, -1e+30
    %v610 = vsel %vm329, %v608, -1e+30
    %v611 = vsel %vm332, %v609, -inf
    %612 = vmax.xlane.f32.xlu0 %v611
    %v613 = vpop.xlane.xlu0 %612
    %v614 = vsel %vm332, %v610, -inf
    %615 = vmax.xlane.f32.xlu0 %v614
    %v616 = vpop.xlane.xlu0 %615
    %v617 = vsub.f32 %v609, %v613
    %v618 = vsub.f32 %v610, %v616
    %v619 = vmul.f32 %v617, 1.442695
    %v620 = vpow.pop %v619
    %v621 = vmul.f32 %v618, 1.442695
    %v622 = vpow.pop %v621
    %v623 = vsel %vm332, %v620, 0.0
    %624 = vadd.xlane.f32.xlu0 %v623
    %v625 = vpop.xlane.xlu0 %624
    %v626 = vsel %vm332, %v622, 0.0
    %627 = vadd.xlane.f32.xlu0 %v626
    %v628 = vpop.xlane.xlu0 %627
    %v629 = vrcp.pop %v625
    %v630 = vrcp.pop %v628
    %v631 = vmul.f32 %v620, %v629
    %v632 = vmul.f32 %v622, %v630
    %v633 = vpack.c.bf16 %v632, %v631
    %v634 = vpack.c.bf16 %v510, %v505
    %v635 = vld [vmem:[%s9] sm:$0x1]
    %v637 = vlaneseq
    %v638 = vshrl.u32 %v637, 7
    %v639 = vsub.s32 0, %v638
    %v640 = vrot.slane %v635, %v639
    %v643 = vsel %vm332, %v633, 0
    %645 = vmatprep.subr.bf16.mxu0 0
    %646 = vmatpush1.bf16.msra.mxu0 0
    %647 = vmatprep.subr.bf16.mxu0 0
    %648 = vmatpush1.bf16.msra.mxu0 0
    %649 = vmatprep.subr.bf16.mxu0 0
    %650 = vmatpush1.bf16.msra.mxu0 0
    %651 = vmatprep.subr.bf16.mxu0 0
    %652 = vmatpush1.bf16.msra.mxu0 0
    %653 = vmatprep.subr.bf16.mxu0 0
    %654 = vmatpush1.bf16.msra.mxu0 0
    %655 = vmatprep.subr.bf16.mxu0 0
    %656 = vmatpush1.bf16.msra.mxu0 0
    %657 = vmatprep.subr.bf16.mxu0 0
    %658 = vmatpush1.bf16.msra.mxu0 0
    %659 = vmatprep.subr.bf16.mxu0 0
    %660 = vmatpush1.bf16.msra.mxu0 %v634
    %661 = vmatprep.subr.bf16.mxu0 0
    %662 = vmatpush2.bf16.msra.mxu0 0
    %663 = vmatprep.subr.bf16.mxu0 0
    %664 = vmatpush2.bf16.msra.mxu0 0
    %665 = vmatprep.subr.bf16.mxu0 0
    %666 = vmatpush2.bf16.msra.mxu0 0
    %667 = vmatprep.subr.bf16.mxu0 0
    %668 = vmatpush2.bf16.msra.mxu0 0
    %669 = vmatprep.subr.bf16.mxu0 0
    %670 = vmatpush2.bf16.msra.mxu0 0
    %671 = vmatprep.subr.bf16.mxu0 0
    %672 = vmatpush2.bf16.msra.mxu0 0
    %673 = vmatprep.subr.bf16.mxu0 0
    %674 = vmatpush2.bf16.msra.mxu0 0
    %675 = vmatprep.subr.bf16.mxu0 0
    %676 = vmatpush2.bf16.msra.mxu0 0
    %677 = vmatprep.mubr.bf16.mxu0 0
    %678 = vmatmul.mubr.bf16.gmra.mxu0 %v643
    %v679 = vpop.f32.mrf.mxu0
    %v680 = vadd.f32 %v640, %v679
    %v681 = vpop.f32.mrf.mxu0
    %v682 = vpop.f32.mrf.mxu0
    %v683 = vadd.f32 %v640, %v682
    %v684 = vpop.f32.mrf.mxu0
    %685 = vdwg.mxu0
    %vm686 = vcmp.gt.f32.partialorder %v680, 0.0
    %vm687 = vcmp.gt.f32.partialorder %v683, 0.0
    %v688 = vmul.f32 %v680, 1.442695
    %v689 = vpow.pop %v688
    %v690 = vmul.f32 %v683, 1.442695
    %v691 = vpow.pop %v690
    %v692 = vsub.f32 %v689, 1.0
    %v693 = vsub.f32 %v691, 1.0
    %v694 = vsel %vm686, %v680, %v692
    %v695 = vsel %vm687, %v683, %v693
    %696 = vst [vmem:[#allocation2] sm:$0xff] %v694
    %697 = vst [vmem:[#allocation2 + $0x8] sm:$0xff] %v695
    %v698 = vld [vmem:[#allocation2] sm:$0xff]
    %v699 = vld [vmem:[#allocation2 + $0x8] sm:$0xff]
    %v700 = vld [vmem:[#allocation12] sm:$0xff]
    %v701 = vld [vmem:[#allocation12 + $0x8] sm:$0xff]
    %v702 = vld [vmem:[#allocation12 + $0x10] sm:$0xff]
    %v703 = vld [vmem:[#allocation12 + $0x18] sm:$0xff]
    %v704 = vld [vmem:[#allocation12 + $0x20] sm:$0xff]
    %v705 = vld [vmem:[#allocation12 + $0x28] sm:$0xff]
    %v706 = vld [vmem:[#allocation12 + $0x30] sm:$0xff]
    %v707 = vld [vmem:[#allocation12 + $0x38] sm:$0xff]
    %v708 = vld [vmem:[#allocation12 + $0x40] sm:$0xff]
    %v709 = vld [vmem:[#allocation12 + $0x48] sm:$0xff]
    %v710 = vld [vmem:[#allocation12 + $0x50] sm:$0xff]
    %v711 = vld [vmem:[#allocation12 + $0x58] sm:$0xff]
    %v712 = vld [vmem:[#allocation12 + $0x60] sm:$0xff]
    %v713 = vld [vmem:[#allocation12 + $0x68] sm:$0xff]
    %v714 = vld [vmem:[#allocation12 + $0x70] sm:$0xff]
    %v715 = vld [vmem:[#allocation12 + $0x78] sm:$0xff]
    %716 = vmatprep.subr.mxu0 0.0
    %717 = vmatpush1.msra.mxu0 %v715
    %718 = vmatprep.subr.mxu0 0.0
    %719 = vmatpush1.msra.mxu0 %v714
    %720 = vmatprep.subr.mxu0 0.0
    %721 = vmatpush1.msra.mxu0 %v713
    %722 = vmatprep.subr.mxu0 0.0
    %723 = vmatpush1.msra.mxu0 %v712
    %724 = vmatprep.subr.mxu0 0.0
    %725 = vmatpush1.msra.mxu0 %v711
    %726 = vmatprep.subr.mxu0 0.0
    %727 = vmatpush1.msra.mxu0 %v710
    %728 = vmatprep.subr.mxu0 0.0
    %729 = vmatpush1.msra.mxu0 %v709
    %730 = vmatprep.subr.mxu0 0.0
    %731 = vmatpush1.msra.mxu0 %v708
    %732 = vmatprep.subr.mxu0 0.0
    %733 = vmatpush1.msra.mxu0 %v707
    %734 = vmatprep.subr.mxu0 0.0
    %735 = vmatpush1.msra.mxu0 %v706
    %736 = vmatprep.subr.mxu0 0.0
    %737 = vmatpush1.msra.mxu0 %v705
    %738 = vmatprep.subr.mxu0 0.0
    %739 = vmatpush1.msra.mxu0 %v704
    %740 = vmatprep.subr.mxu0 0.0
    %741 = vmatpush1.msra.mxu0 %v703
    %742 = vmatprep.subr.mxu0 0.0
    %743 = vmatpush1.msra.mxu0 %v702
    %744 = vmatprep.subr.mxu0 0.0
    %745 = vmatpush1.msra.mxu0 %v701
    %746 = vmatprep.subr.mxu0 0.0
    %747 = vmatpush1.msra.mxu0 %v700
    %748 = vmatprep.subr.mxu0 0.0
    %749 = vmatpush2.msra.mxu0 0.0
    %750 = vmatprep.subr.mxu0 0.0
    %751 = vmatpush2.msra.mxu0 0.0
    %752 = vmatprep.subr.mxu0 0.0
    %753 = vmatpush2.msra.mxu0 0.0
    %754 = vmatprep.subr.mxu0 0.0
    %755 = vmatpush2.msra.mxu0 0.0
    %756 = vmatprep.subr.mxu0 0.0
    %757 = vmatpush2.msra.mxu0 0.0
    %758 = vmatprep.subr.mxu0 0.0
    %759 = vmatpush2.msra.mxu0 0.0
    %760 = vmatprep.subr.mxu0 0.0
    %761 = vmatpush2.msra.mxu0 0.0
    %762 = vmatprep.subr.mxu0 0.0
    %763 = vmatpush2.msra.mxu0 0.0
    %764 = vmatprep.subr.mxu0 0.0
    %765 = vmatpush2.msra.mxu0 0.0
    %766 = vmatprep.subr.mxu0 0.0
    %767 = vmatpush2.msra.mxu0 0.0
    %768 = vmatprep.subr.mxu0 0.0
    %769 = vmatpush2.msra.mxu0 0.0
    %770 = vmatprep.subr.mxu0 0.0
    %771 = vmatpush2.msra.mxu0 0.0
    %772 = vmatprep.subr.mxu0 0.0
    %773 = vmatpush2.msra.mxu0 0.0
    %774 = vmatprep.subr.mxu0 0.0
    %775 = vmatpush2.msra.mxu0 0.0
    %776 = vmatprep.subr.mxu0 0.0
    %777 = vmatpush2.msra.mxu0 0.0
    %778 = vmatprep.subr.mxu0 0.0
    %779 = vmatpush2.msra.mxu0 0.0
    %780 = vmatprep.mubr.f32.mxu0 0.0
    %781 = vmatmul.mubr.f32.gmra.mxu0 %v698
    %v782 = vpop.f32.mrf.mxu0
    %v783 = vadd.f32 0.0, %v782
    %v784 = vpop.f32.mrf.mxu0
    %785 = vmatprep.mubr.f32.mxu0 0.0
    %786 = vmatmul.mubr.f32.gmra.mxu0 %v699
    %v787 = vpop.f32.mrf.mxu0
    %v788 = vadd.f32 0.0, %v787
    %v789 = vpop.f32.mrf.mxu0
    %790 = vdwg.mxu0
    %v791 = vld [vmem:[%s12] sm:$0x1]
    %v793 = vlaneseq
    %v794 = vshrl.u32 %v793, 7
    %v795 = vsub.s32 0, %v794
    %v796 = vrot.slane %v791, %v795
    %v798 = vmul.f32 %v783, %v796
    %v799 = vmul.f32 %v788, %v796
    %800 = vadd.xlane.f32.xlu0 %v798
    %v801 = vpop.xlane.xlu0 %800
    %802 = vadd.xlane.f32.xlu0 %v799
    %v803 = vpop.xlane.xlu0 %802
    %v804 = vld [vmem:[%s11] sm:$0x1]
    %805 = vmatprep.subr.mxu0 0.0
    %806 = vmatpush1.xpose.msra.mxu0 0.0
    %807 = vmatprep.subr.mxu0 0.0
    %808 = vmatpush1.xpose.msra.mxu0 0.0
    %809 = vmatprep.subr.mxu0 0.0
    %810 = vmatpush1.xpose.msra.mxu0 0.0
    %811 = vmatprep.subr.mxu0 0.0
    %812 = vmatpush1.xpose.msra.mxu0 0.0
    %813 = vmatprep.subr.mxu0 0.0
    %814 = vmatpush1.xpose.msra.mxu0 0.0
    %815 = vmatprep.subr.mxu0 0.0
    %816 = vmatpush1.xpose.msra.mxu0 0.0
    %817 = vmatprep.subr.mxu0 0.0
    %818 = vmatpush1.xpose.msra.mxu0 0.0
    %819 = vmatprep.subr.mxu0 0.0
    %820 = vmatpush1.xpose.msra.mxu0 0.0
    %821 = vmatprep.subr.mxu0 0.0
    %822 = vmatpush1.xpose.msra.mxu0 0.0
    %823 = vmatprep.subr.mxu0 0.0
    %824 = vmatpush1.xpose.msra.mxu0 0.0
    %825 = vmatprep.subr.mxu0 0.0
    %826 = vmatpush1.xpose.msra.mxu0 0.0
    %827 = vmatprep.subr.mxu0 0.0
    %828 = vmatpush1.xpose.msra.mxu0 0.0
    %829 = vmatprep.subr.mxu0 0.0
    %830 = vmatpush1.xpose.msra.mxu0 0.0
    %831 = vmatprep.subr.mxu0 0.0
    %832 = vmatpush1.xpose.msra.mxu0 0.0
    %833 = vmatprep.subr.mxu0 0.0
    %834 = vmatpush1.xpose.msra.mxu0 %v788
    %835 = vmatprep.subr.mxu0 0.0
    %836 = vmatpush1.xpose.msra.mxu0 %v783
    %837 = vmatprep.subr.mxu0 0.0
    %838 = vmatpush2.xpose.msra.mxu0 0.0
    %839 = vmatprep.subr.mxu0 0.0
    %840 = vmatpush2.xpose.msra.mxu0 0.0
    %841 = vmatprep.subr.mxu0 0.0
    %842 = vmatpush2.xpose.msra.mxu0 0.0
    %843 = vmatprep.subr.mxu0 0.0
    %844 = vmatpush2.xpose.msra.mxu0 0.0
    %845 = vmatprep.subr.mxu0 0.0
    %846 = vmatpush2.xpose.msra.mxu0 0.0
    %847 = vmatprep.subr.mxu0 0.0
    %848 = vmatpush2.xpose.msra.mxu0 0.0
    %849 = vmatprep.subr.mxu0 0.0
    %850 = vmatpush2.xpose.msra.mxu0 0.0
    %851 = vmatprep.subr.mxu0 0.0
    %852 = vmatpush2.xpose.msra.mxu0 0.0
    %853 = vmatprep.subr.mxu0 0.0
    %854 = vmatpush2.xpose.msra.mxu0 0.0
    %855 = vmatprep.subr.mxu0 0.0
    %856 = vmatpush2.xpose.msra.mxu0 0.0
    %857 = vmatprep.subr.mxu0 0.0
    %858 = vmatpush2.xpose.msra.mxu0 0.0
    %859 = vmatprep.subr.mxu0 0.0
    %860 = vmatpush2.xpose.msra.mxu0 0.0
    %861 = vmatprep.subr.mxu0 0.0
    %862 = vmatpush2.xpose.msra.mxu0 0.0
    %863 = vmatprep.subr.mxu0 0.0
    %864 = vmatpush2.xpose.msra.mxu0 0.0
    %865 = vmatprep.subr.mxu0 0.0
    %866 = vmatpush2.xpose.msra.mxu0 0.0
    %867 = vmatprep.subr.mxu0 0.0
    %868 = vmatpush2.xpose.msra.mxu0 0.0
    %869 = vmatprep.mubr.f32.mxu0 0.0
    %870 = vmatmul.mubr.f32.gmra.mxu0 %v804
    %v871 = vpop.f32.mrf.mxu0
    %v872 = vadd.f32 0.0, %v871
    %v873 = vpop.f32.mrf.mxu0
    %874 = vdwg.mxu0
    %v875 = vlaneseq
    %v876 = vshrl.u32 %v875, 7
    %v877 = vsub.s32 0, %v876
    %v878 = vrot.slane %v872, %v877
    %v879 = vadd.f32 %v801, %v878
    %v880 = vadd.f32 %v803, %v878
    %vm881 = vcmp.gt.f32.partialorder %v879, 0.0
    %vm882 = vcmp.gt.f32.partialorder %v880, 0.0
    %v883 = vmul.f32 %v879, 0.2
    %v884 = vmul.f32 %v880, 0.2
    %v885 = vsel %vm881, %v879, %v883
    %v886 = vsel %vm882, %v880, %v884
    %v887 = vsel %vm328, %v885, -1e+30
    %v888 = vsel %vm329, %v886, -1e+30
    %v889 = vsel %vm332, %v887, -inf
    %890 = vmax.xlane.f32.xlu0 %v889
    %v891 = vpop.xlane.xlu0 %890
    %v892 = vsel %vm332, %v888, -inf
    %893 = vmax.xlane.f32.xlu0 %v892
    %v894 = vpop.xlane.xlu0 %893
    %v895 = vsub.f32 %v887, %v891
    %v896 = vsub.f32 %v888, %v894
    %v897 = vmul.f32 %v895, 1.442695
    %v898 = vpow.pop %v897
    %v899 = vmul.f32 %v896, 1.442695
    %v900 = vpow.pop %v899
    %v901 = vsel %vm332, %v898, 0.0
    %902 = vadd.xlane.f32.xlu0 %v901
    %v903 = vpop.xlane.xlu0 %902
    %v904 = vsel %vm332, %v900, 0.0
    %905 = vadd.xlane.f32.xlu0 %v904
    %v906 = vpop.xlane.xlu0 %905
    %v907 = vrcp.pop %v903
    %v908 = vrcp.pop %v906
    %v909 = vmul.f32 %v898, %v907
    %v910 = vmul.f32 %v900, %v908
    %v911 = vpack.c.bf16 %v910, %v909
    %v912 = vpack.c.bf16 %v788, %v783
    %v913 = vld [vmem:[%s13] sm:$0x1]
    %v915 = vlaneseq
    %v916 = vshrl.u32 %v915, 7
    %v917 = vsub.s32 0, %v916
    %v918 = vrot.slane %v913, %v917
    %v921 = vsel %vm332, %v911, 0
    %923 = vmatprep.subr.bf16.mxu0 0
    %924 = vmatpush1.bf16.msra.mxu0 0
    %925 = vmatprep.subr.bf16.mxu0 0
    %926 = vmatpush1.bf16.msra.mxu0 0
    %927 = vmatprep.subr.bf16.mxu0 0
    %928 = vmatpush1.bf16.msra.mxu0 0
    %929 = vmatprep.subr.bf16.mxu0 0
    %930 = vmatpush1.bf16.msra.mxu0 0
    %931 = vmatprep.subr.bf16.mxu0 0
    %932 = vmatpush1.bf16.msra.mxu0 0
    %933 = vmatprep.subr.bf16.mxu0 0
    %934 = vmatpush1.bf16.msra.mxu0 0
    %935 = vmatprep.subr.bf16.mxu0 0
    %936 = vmatpush1.bf16.msra.mxu0 0
    %937 = vmatprep.subr.bf16.mxu0 0
    %938 = vmatpush1.bf16.msra.mxu0 %v912
    %939 = vmatprep.subr.bf16.mxu0 0
    %940 = vmatpush2.bf16.msra.mxu0 0
    %941 = vmatprep.subr.bf16.mxu0 0
    %942 = vmatpush2.bf16.msra.mxu0 0
    %943 = vmatprep.subr.bf16.mxu0 0
    %944 = vmatpush2.bf16.msra.mxu0 0
    %945 = vmatprep.subr.bf16.mxu0 0
    %946 = vmatpush2.bf16.msra.mxu0 0
    %947 = vmatprep.subr.bf16.mxu0 0
    %948 = vmatpush2.bf16.msra.mxu0 0
    %949 = vmatprep.subr.bf16.mxu0 0
    %950 = vmatpush2.bf16.msra.mxu0 0
    %951 = vmatprep.subr.bf16.mxu0 0
    %952 = vmatpush2.bf16.msra.mxu0 0
    %953 = vmatprep.subr.bf16.mxu0 0
    %954 = vmatpush2.bf16.msra.mxu0 0
    %955 = vmatprep.mubr.bf16.mxu0 0
    %956 = vmatmul.mubr.bf16.gmra.mxu0 %v921
    %v957 = vpop.f32.mrf.mxu0
    %v958 = vadd.f32 %v918, %v957
    %v959 = vpop.f32.mrf.mxu0
    %v960 = vpop.f32.mrf.mxu0
    %v961 = vadd.f32 %v918, %v960
    %v962 = vpop.f32.mrf.mxu0
    %963 = vdwg.mxu0
    %vm964 = vcmp.gt.f32.partialorder %v958, 0.0
    %vm965 = vcmp.gt.f32.partialorder %v961, 0.0
    %v966 = vmul.f32 %v958, 1.442695
    %v967 = vpow.pop %v966
    %v968 = vmul.f32 %v961, 1.442695
    %v969 = vpow.pop %v968
    %v970 = vsub.f32 %v967, 1.0
    %v971 = vsub.f32 %v969, 1.0
    %v972 = vsel %vm964, %v958, %v970
    %v973 = vsel %vm965, %v961, %v971
    %974 = vst [vmem:[#allocation2] sm:$0xff] %v972
    %975 = vst [vmem:[#allocation2 + $0x8] sm:$0xff] %v973
    %v976 = vld [vmem:[#allocation2] sm:$0xff]
    %v977 = vld [vmem:[#allocation2 + $0x8] sm:$0xff]
    %v978 = vld [vmem:[%s14] sm:$0x1]
    %v979 = vld [vmem:[#allocation3] sm:$0x1]
    %981 = vset.pattern.permute.xlu0 0
    %982 = vperm.xlu0 %981, %v979
    %v983 = vpop.permute.xlu0 %982
    %v985 = vlaneseq
    %v986 = vshrl.u32 %v985, 7
    %v987 = vsub.s32 0, %v986
    %v988 = vrot.slane %v983, %v987
    %989 = vmatprep.subr.mxu0 0.0
    %990 = vmatpush1.xpose.msra.mxu0 0.0
    %991 = vmatprep.subr.mxu0 0.0
    %992 = vmatpush1.xpose.msra.mxu0 0.0
    %993 = vmatprep.subr.mxu0 0.0
    %994 = vmatpush1.xpose.msra.mxu0 0.0
    %995 = vmatprep.subr.mxu0 0.0
    %996 = vmatpush1.xpose.msra.mxu0 0.0
    %997 = vmatprep.subr.mxu0 0.0
    %998 = vmatpush1.xpose.msra.mxu0 0.0
    %999 = vmatprep.subr.mxu0 0.0
    %1000 = vmatpush1.xpose.msra.mxu0 0.0
    %1001 = vmatprep.subr.mxu0 0.0
    %1002 = vmatpush1.xpose.msra.mxu0 0.0
    %1003 = vmatprep.subr.mxu0 0.0
    %1004 = vmatpush1.xpose.msra.mxu0 0.0
    %1005 = vmatprep.subr.mxu0 0.0
    %1006 = vmatpush1.xpose.msra.mxu0 0.0
    %1007 = vmatprep.subr.mxu0 0.0
    %1008 = vmatpush1.xpose.msra.mxu0 0.0
    %1009 = vmatprep.subr.mxu0 0.0
    %1010 = vmatpush1.xpose.msra.mxu0 0.0
    %1011 = vmatprep.subr.mxu0 0.0
    %1012 = vmatpush1.xpose.msra.mxu0 0.0
    %1013 = vmatprep.subr.mxu0 0.0
    %1014 = vmatpush1.xpose.msra.mxu0 0.0
    %1015 = vmatprep.subr.mxu0 0.0
    %1016 = vmatpush1.xpose.msra.mxu0 0.0
    %1017 = vmatprep.subr.mxu0 0.0
    %1018 = vmatpush1.xpose.msra.mxu0 %v977
    %1019 = vmatprep.subr.mxu0 0.0
    %1020 = vmatpush1.xpose.msra.mxu0 %v976
    %1021 = vmatprep.subr.mxu0 0.0
    %1022 = vmatpush2.xpose.msra.mxu0 0.0
    %1023 = vmatprep.subr.mxu0 0.0
    %1024 = vmatpush2.xpose.msra.mxu0 0.0
    %1025 = vmatprep.subr.mxu0 0.0
    %1026 = vmatpush2.xpose.msra.mxu0 0.0
    %1027 = vmatprep.subr.mxu0 0.0
    %1028 = vmatpush2.xpose.msra.mxu0 0.0
    %1029 = vmatprep.subr.mxu0 0.0
    %1030 = vmatpush2.xpose.msra.mxu0 0.0
    %1031 = vmatprep.subr.mxu0 0.0
    %1032 = vmatpush2.xpose.msra.mxu0 0.0
    %1033 = vmatprep.subr.mxu0 0.0
    %1034 = vmatpush2.xpose.msra.mxu0 0.0
    %1035 = vmatprep.subr.mxu0 0.0
    %1036 = vmatpush2.xpose.msra.mxu0 0.0
    %1037 = vmatprep.subr.mxu0 0.0
    %1038 = vmatpush2.xpose.msra.mxu0 0.0
    %1039 = vmatprep.subr.mxu0 0.0
    %1040 = vmatpush2.xpose.msra.mxu0 0.0
    %1041 = vmatprep.subr.mxu0 0.0
    %1042 = vmatpush2.xpose.msra.mxu0 0.0
    %1043 = vmatprep.subr.mxu0 0.0
    %1044 = vmatpush2.xpose.msra.mxu0 0.0
    %1045 = vmatprep.subr.mxu0 0.0
    %1046 = vmatpush2.xpose.msra.mxu0 0.0
    %1047 = vmatprep.subr.mxu0 0.0
    %1048 = vmatpush2.xpose.msra.mxu0 0.0
    %1049 = vmatprep.subr.mxu0 0.0
    %1050 = vmatpush2.xpose.msra.mxu0 0.0
    %1051 = vmatprep.subr.mxu0 0.0
    %1052 = vmatpush2.xpose.msra.mxu0 0.0
    %1053 = vmatprep.mubr.f32.mxu0 0.0
    %1054 = vmatmul.mubr.f32.gmra.mxu0 %v978
    %v1055 = vpop.f32.mrf.mxu0
    %v1056 = vadd.f32 %v988, %v1055
    %v1057 = vpop.f32.mrf.mxu0
    %1058 = vdwg.mxu0
    %v1059 = vsub.f32 0.0, %v1056
    %v1060 = vmul.f32 %v1059, 1.442695
    %v1061 = vpow.pop %v1060
    %v1062 = vadd.f32 %v1061, 1.0
    %v1063 = vrcp.pop %v1062
    %v1064 = vmul.f32 1.0, %v1063
    %vm1065 = vcmask 122880
    %1066 = vst.msk [vmem:[#allocation13] sm:$0x1] %vm1065, %v1064
    // Predicated region
    $region86: #{tpu_custom_call.1} parent=1 // pred_check
      _
    $region87: #{tpu_custom_call.1} parent=1 // pred_check_branch
      %1068 = sbr.rel (0) target = $region89
    $region88: #{tpu_custom_call.1} parent=1 // pred_region
      %s1070 = ssub.s32 16, 16
      %1071 = vsyncadd [#allocation6], %s1070
      %s1073 = sshll.u32 [#allocation13], 4
      %s1074 = int_to_ptr.vmem [resolvable:$true] %s1073
      %1076 = dma.vmem_to_hbm [thread:$0]  %s1074, 16, %s16, [#allocation6]
    $region89: #{tpu_custom_call.1} parent=1 // pred_fallthru
      _
    // Predicated region
    $region90: #{tpu_custom_call.1} parent=1 // pred_check
      _
    $region91: #{tpu_custom_call.1} parent=1 // pred_check_branch
      %1078 = sbr.rel (0) target = $region93
    $region92: #{tpu_custom_call.1} parent=1 // pred_region
      %1079 = dma.done [#allocation6], 16
    $region93: #{tpu_custom_call.1} parent=1 // pred_fallthru
      _
    %1080 = vsyncpa [#allocation5], 1
    %1081 = vsyncpa [#allocation8], 1
    %1082 = vsyncpa [#allocation11], 1
    %1083 = vsyncpa [#allocation6], 1

</llo_original>
